<compile_context>
chip_gen: v6e
topology: v6e:2x2x1
jax: 0.10.0
libtpu: 0.0.40
codegen_flags: <defaults>
</compile_context>

<pallas_src>
import functools

import jax
import jax.numpy as jnp
from jax.experimental import pallas as pl
from jax.experimental.pallas import tpu as pltpu


# ---------------------- fused matmul + bias (+ReLU) kernel ------------------
def _linear_kernel(x_ref, w_ref, b_ref, o_ref, acc_ref, *, apply_relu):
    k = pl.program_id(2)

    @pl.when(k == 0)
    def _():
        acc_ref[...] = jnp.zeros_like(acc_ref)

    acc_ref[...] += jnp.dot(x_ref[...], w_ref[...],
                            preferred_element_type=jnp.float32)

    @pl.when(k == pl.num_programs(2) - 1)
    def _():
        out = acc_ref[...] + b_ref[...].astype(jnp.float32)
        if apply_relu:
            out = jnp.maximum(out, 0.0)
        o_ref[...] = out.astype(o_ref.dtype)


def _round_up(x, m):
    return (x + m - 1) // m * m


def _pick_block(dim, max_block, quantum, pad_block):
    """Pick (block, padded_dim) for one matmul axis.

    A block must be a multiple of `quantum` (sublane/lane granularity) or
    equal to the (possibly padded) full dimension.
    """
    if dim <= max_block:
        return dim, dim                       # full dim: always legal
    blk = (max_block // quantum) * quantum
    while blk >= quantum:
        if dim % blk == 0:
            return blk, dim
        blk -= quantum
    return pad_block, _round_up(dim, pad_block)


def linear_pallas(x, w, b, *, relu, out_dtype):
    """out = act(x @ w + b).  x:(M,K), w:(K,N), b:(1,N) -> (M,N) of out_dtype."""
    M, K = x.shape
    K2, N = w.shape
    assert K == K2 and b.shape == (1, N)

    # Taller M tiles when the K row is short so each grid step moves >~0.5 MiB
    # (per-step overhead amortization); clamp so worst-case blocks fit VMEM.
    bm_max = (512 * 1024) // max(K * x.dtype.itemsize, 1)
    bm_max = max(256, min(1024, bm_max)) // 8 * 8

    bm, Mp = _pick_block(M, bm_max, 8, 256)     # output-tile rows
    bn, Np = _pick_block(N, 512, 128, 256)      # output-tile lanes
    bk, Kp = _pick_block(K, 1024, 128, 512)     # reduction depth per step

    if (Mp, Kp) != (M, K):
        x = jnp.pad(x, ((0, Mp - M), (0, Kp - K)))
    if (Kp, Np) != (K, N):
        w = jnp.pad(w, ((0, Kp - K), (0, Np - N)))
    if Np != N:
        b = jnp.pad(b, ((0, 0), (0, Np - N)))

    grid = (Mp // bm, Np // bn, Kp // bk)       # K reduction innermost

    cost = pl.CostEstimate(
        flops=2 * Mp * Kp * Np,
        transcendentals=0,
        bytes_accessed=(Mp * Kp * x.dtype.itemsize
                        + Kp * Np * w.dtype.itemsize
                        + Mp * Np * jnp.dtype(out_dtype).itemsize),
    )

    out = pl.pallas_call(
        functools.partial(_linear_kernel, apply_relu=relu),
        out_shape=jax.ShapeDtypeStruct((Mp, Np), out_dtype),
        grid=grid,
        in_specs=[
            pl.BlockSpec((bm, bk), lambda i, j, k: (i, k)),
            pl.BlockSpec((bk, bn), lambda i, j, k: (k, j)),
            pl.BlockSpec((1, bn), lambda i, j, k: (0, j)),
        ],
        out_specs=pl.BlockSpec((bm, bn), lambda i, j, k: (i, j)),
        scratch_shapes=[pltpu.VMEM((bm, bn), jnp.float32)],
        compiler_params=pltpu.CompilerParams(
            dimension_semantics=("parallel", "parallel", "arbitrary"),
            vmem_limit_bytes=32 * 1024 * 1024,
        ),
        cost_estimate=cost,
    )(x, w, b)

    if (Mp, Np) != (M, N):
        out = out[:M, :N]
    return out


# ----------------------------- conv via im2col ------------------------------
def _im2col_nhwc(x, kh, kw, stride):
    """x: (N, H, W, C) -> (N*OH*OW, KH*KW*C); channels stay on lanes."""
    n, h, w, c = x.shape
    oh = (h - kh) // stride + 1
    ow = (w - kw) // stride + 1
    patches = []
    for i in range(kh):
        for j in range(kw):
            patches.append(
                x[:, i:i + stride * oh:stride, j:j + stride * ow:stride, :])
    p = jnp.stack(patches, axis=3)                 # (n, oh, ow, kh*kw, c)
    return p.reshape(n * oh * ow, kh * kw * c), oh, ow


def conv2d_relu(x, w_mat, b, *, kh, kw, stride):
    """x: NHWC bf16, w_mat: (kh*kw*Cin, Cout) bf16, b: (1, Cout) f32 -> NHWC bf16."""
    n = x.shape[0]
    cols, oh, ow = _im2col_nhwc(x, kh, kw, stride)
    y = linear_pallas(cols, w_mat, b, relu=True, out_dtype=jnp.bfloat16)
    return y.reshape(n, oh, ow, w_mat.shape[1])


# -------------------------------- parameters --------------------------------
def _conv_out_hw(h, w):
    def o(s, k, st):
        return (s - k) // st + 1
    h, w = o(h, 8, 4), o(w, 8, 4)
    h, w = o(h, 4, 2), o(w, 4, 2)
    h, w = o(h, 3, 1), o(w, 3, 1)
    return h, w


def init_torch_params(key, input_shape, action_dims, init_w=0.003):
    """PyTorch-layout f32 params (same shapes / init distributions as the module)."""
    c_in, h, w = input_shape
    keys = jax.random.split(key, 10)

    def uni(k, shape, fan_in):
        bound = 1.0 / float(fan_in) ** 0.5
        return jax.random.uniform(k, shape, jnp.float32, -bound, bound)

    h3, w3 = _conv_out_hw(h, w)
    conv_out_dim = 64 * h3 * w3
    return {
        "w1": uni(keys[0], (32, c_in, 8, 8), c_in * 8 * 8),
        "b1": uni(keys[1], (32,), c_in * 8 * 8),
        "w2": uni(keys[2], (64, 32, 4, 4), 32 * 4 * 4),
        "b2": uni(keys[3], (64,), 32 * 4 * 4),
        "w3": uni(keys[4], (64, 64, 3, 3), 64 * 3 * 3),
        "b3": uni(keys[5], (64,), 64 * 3 * 3),
        "wfc": uni(keys[6], (512, conv_out_dim), conv_out_dim),
        "bfc": uni(keys[7], (512,), conv_out_dim),
        "wv": jax.random.uniform(keys[8], (action_dims, 512), jnp.float32,
                                 -init_w, init_w),
        "bv": jax.random.uniform(keys[9], (action_dims,), jnp.float32,
                                 -init_w, init_w),
    }


def prepare_params(p, input_shape, action_dims):
    """One-time conversion to kernel-ready layouts (pre-transposed, bf16, padded)."""
    c_in, h, w = input_shape
    h3, w3 = _conv_out_hw(h, w)

    def conv_mat(wt):   # (Cout, Cin, KH, KW) -> (KH*KW*Cin, Cout), bf16
        co, ci, kh, kw = wt.shape
        return (jnp.transpose(wt, (2, 3, 1, 0))
                   .reshape(kh * kw * ci, co).astype(jnp.bfloat16))

    # Fold the PyTorch NCHW (c,h,w) flatten order into the fc weight so the
    # kernel-side NHWC (h,w,c) flatten is bit-equivalent in ordering.
    wfc = (p["wfc"].reshape(512, 64, h3, w3)
                   .transpose(2, 3, 1, 0)
                   .reshape(h3 * w3 * 64, 512)
                   .astype(jnp.bfloat16))

    a_pad = _round_up(action_dims, 128)      # lane-dense value-head output
    wv = jnp.zeros((512, a_pad), jnp.float32).at[:, :action_dims].set(p["wv"].T)
    bv = jnp.zeros((1, a_pad), jnp.float32).at[0, :action_dims].set(p["bv"])

    return {
        "w1": conv_mat(p["w1"]), "b1": p["b1"].reshape(1, -1),
        "w2": conv_mat(p["w2"]), "b2": p["b2"].reshape(1, -1),
        "w3": conv_mat(p["w3"]), "b3": p["b3"].reshape(1, -1),
        "wfc": wfc, "bfc": p["bfc"].reshape(1, -1),
        "wv": wv, "bv": bv,
    }


# --------------------------------- forward ----------------------------------
def dq_forward(params, obs, action_dims):
    # PyTorch: if obs.max() > 1.0: obs = obs / 255.0  (kept data-dependent)
    scale = jnp.where(jnp.max(obs) > 1.0, 1.0 / 255.0, 1.0)
    x = obs.astype(jnp.float32) * scale
    x = jnp.transpose(x, (0, 2, 3, 1)).astype(jnp.bfloat16)   # NCHW -> NHWC once
    x = conv2d_relu(x, params["w1"], params["b1"], kh=8, kw=8, stride=4)
    x = conv2d_relu(x, params["w2"], params["b2"], kh=4, kw=4, stride=2)
    x = conv2d_relu(x, params["w3"], params["b3"], kh=3, kw=3, stride=1)
    x = x.reshape(x.shape[0], -1)                             # NHWC flatten
    x = linear_pallas(x, params["wfc"], params["bfc"], relu=True,
                      out_dtype=jnp.float32)
    value = linear_pallas(x, params["wv"], params["bv"], relu=False,
                          out_dtype=jnp.float32)
    return value[:, :action_dims]


if __name__ == "__main__":
    key = jax.random.PRNGKey(0)
    pkey, okey = jax.random.split(key)

    # Smallest spatial size that survives the 8/4 -> 4/2 -> 3/1 conv stack.
    input_shape = (4, 36, 36)     # (C, H, W)
    action_dims = 6
    batch = 2

    torch_layout = init_torch_params(pkey, input_shape, action_dims)
    params = prepare_params(torch_layout, input_shape, action_dims)

    # Raw pixel-scale observations (exercise the /255 branch).
    obs = jax.random.uniform(okey, (batch,) + input_shape, jnp.float32, 0.0, 255.0)

    fwd = jax.jit(lambda p, o: dq_forward(p, o, action_dims))
    values = fwd(params, obs)
    jax.block_until_ready(values)

    assert values.shape == (batch, action_dims)
    assert values.dtype == jnp.float32
    assert bool(jnp.isfinite(values).all())
    print("KERNEL_OK")
</pallas_src>

<mosaic_0001>
module attributes {stable_mosaic.version = 11 : i64} {
  func.func @_linear_kernel(%arg0: i32, %arg1: i32, %arg2: i32, %arg3: memref<128x256xbf16, #tpu.memory_space<vmem>>, %arg4: memref<256x32xbf16, #tpu.memory_space<vmem>>, %arg5: memref<1x32xf32, #tpu.memory_space<vmem>>, %arg6: memref<128x32xbf16, #tpu.memory_space<vmem>>, %arg7: memref<128x32xf32, #tpu.memory_space<vmem>>) attributes {dimension_semantics = [#tpu.dimension_semantics<parallel>, #tpu.dimension_semantics<parallel>, #tpu.dimension_semantics<arbitrary>], iteration_bounds = array<i64: 1, 1, 1>, scalar_prefetch = 0 : i64, scratch_operands = 1 : i64, tpu.core_type = #tpu.core_type<tc>, window_params = [{transform_indices = @transform_0, window_bounds = array<i64: 128, 256>}, {transform_indices = @transform_1, window_bounds = array<i64: 256, 32>}, {transform_indices = @transform_2, window_bounds = array<i64: 1, 32>}, {transform_indices = @transform_3, window_bounds = array<i64: 128, 32>}]} {
    %c0_i32 = arith.constant 0 : i32
    %0 = arith.cmpi eq, %arg2, %c0_i32 : i32
    %1 = arith.extui %0 : i1 to i32
    %c0_i32_0 = arith.constant 0 : i32
    %2 = arith.cmpi ne, %1, %c0_i32_0 : i32
    scf.if %2 {
      %cst_10 = arith.constant 0.000000e+00 : f32
      %12 = vector.broadcast %cst_10 : f32 to vector<128x32xf32>
      %c0_11 = arith.constant 0 : index
      %c0_12 = arith.constant 0 : index
      %13 = vector.load %arg7[%c0_11, %c0_12] : memref<128x32xf32, #tpu.memory_space<vmem>>, vector<128x32xf32>
      tpu.vector_store %arg7[%c0_11, %c0_12], %12 {strides = array<i32>} : memref<128x32xf32, #tpu.memory_space<vmem>>, vector<128x32xf32>,
    } else {
    }
    %c0 = arith.constant 0 : index
    %c0_1 = arith.constant 0 : index
    %3 = vector.load %arg7[%c0, %c0_1] : memref<128x32xf32, #tpu.memory_space<vmem>>, vector<128x32xf32>
    %c0_2 = arith.constant 0 : index
    %c0_3 = arith.constant 0 : index
    %4 = vector.load %arg3[%c0_2, %c0_3] : memref<128x256xbf16, #tpu.memory_space<vmem>>, vector<128x256xbf16>
    %c0_4 = arith.constant 0 : index
    %c0_5 = arith.constant 0 : index
    %5 = vector.load %arg4[%c0_4, %c0_5] : memref<256x32xbf16, #tpu.memory_space<vmem>>, vector<256x32xbf16>
    %cst = arith.constant dense<0.000000e+00> : vector<128x32xf32>
    %6 = tpu.matmul %4, %5, %cst {dimension_numbers = #tpu.dot_dimension_numbers<[1], [0], [0], [1], [0, 0, 1, 1], [], []>} : vector<128x256xbf16>, vector<256x32xbf16>, vector<128x32xf32> -> vector<128x32xf32>
    %7 = arith.addf %3, %6 : vector<128x32xf32>
    %c0_6 = arith.constant 0 : index
    %c0_7 = arith.constant 0 : index
    %8 = vector.load %arg7[%c0_6, %c0_7] : memref<128x32xf32, #tpu.memory_space<vmem>>, vector<128x32xf32>
    tpu.vector_store %arg7[%c0_6, %c0_7], %7 {strides = array<i32>} : memref<128x32xf32, #tpu.memory_space<vmem>>, vector<128x32xf32>,
    %c0_i32_8 = arith.constant 0 : i32
    %9 = arith.cmpi eq, %arg2, %c0_i32_8 : i32
    %10 = arith.extui %9 : i1 to i32
    %c0_i32_9 = arith.constant 0 : i32
    %11 = arith.cmpi ne, %10, %c0_i32_9 : i32
    scf.if %11 {
      %c0_10 = arith.constant 0 : index
      %c0_11 = arith.constant 0 : index
      %12 = vector.load %arg7[%c0_10, %c0_11] : memref<128x32xf32, #tpu.memory_space<vmem>>, vector<128x32xf32>
      %c0_12 = arith.constant 0 : index
      %c0_13 = arith.constant 0 : index
      %13 = vector.load %arg5[%c0_12, %c0_13] : memref<1x32xf32, #tpu.memory_space<vmem>>, vector<1x32xf32>
      %14 = vector.broadcast %13 : vector<1x32xf32> to vector<128x32xf32>
      %15 = arith.addf %12, %14 : vector<128x32xf32>
      %cst_14 = arith.constant 0.000000e+00 : f32
      %16 = vector.broadcast %cst_14 : f32 to vector<128x32xf32>
      %17 = arith.maximumf %15, %16 : vector<128x32xf32>
      %18 = arith.truncf %17 : vector<128x32xf32> to vector<128x32xbf16>
      %c0_15 = arith.constant 0 : index
      %c0_16 = arith.constant 0 : index
      %19 = vector.load %arg6[%c0_15, %c0_16] : memref<128x32xbf16, #tpu.memory_space<vmem>>, vector<128x32xbf16>
      tpu.vector_store %arg6[%c0_15, %c0_16], %18 {strides = array<i32>} : memref<128x32xbf16, #tpu.memory_space<vmem>>, vector<128x32xbf16>,
    } else {
    }
    return
  }
  func.func @transform_0(%arg0: i32, %arg1: i32, %arg2: i32) -> (i32, i32) {
    %c0_i32 = arith.constant 0 : i32
    return %arg0, %arg2 : i32, i32
  }
  func.func @transform_1(%arg0: i32, %arg1: i32, %arg2: i32) -> (i32, i32) {
    %c0_i32 = arith.constant 0 : i32
    return %arg2, %arg1 : i32, i32
  }
  func.func @transform_2(%arg0: i32, %arg1: i32, %arg2: i32) -> (i32, i32) {
    %c0_i32 = arith.constant 0 : i32
    %c0_i32_0 = arith.constant 0 : i32
    return %c0_i32, %arg1 : i32, i32
  }
  func.func @transform_3(%arg0: i32, %arg1: i32, %arg2: i32) -> (i32, i32) {
    %c0_i32 = arith.constant 0 : i32
    return %arg0, %arg1 : i32, i32
  }
}

module attributes {stable_mosaic.version = 11 : i64} {
  func.func @_linear_kernel(%arg0: i32, %arg1: i32, %arg2: i32, %arg3: memref<18x512xbf16, #tpu.memory_space<vmem>>, %arg4: memref<512x64xbf16, #tpu.memory_space<vmem>>, %arg5: memref<1x64xf32, #tpu.memory_space<vmem>>, %arg6: memref<18x64xbf16, #tpu.memory_space<vmem>>, %arg7: memref<18x64xf32, #tpu.memory_space<vmem>>) attributes {dimension_semantics = [#tpu.dimension_semantics<parallel>, #tpu.dimension_semantics<parallel>, #tpu.dimension_semantics<arbitrary>], iteration_bounds = array<i64: 1, 1, 1>, scalar_prefetch = 0 : i64, scratch_operands = 1 : i64, tpu.core_type = #tpu.core_type<tc>, window_params = [{transform_indices = @transform_0, window_bounds = array<i64: 18, 512>}, {transform_indices = @transform_1, window_bounds = array<i64: 512, 64>}, {transform_indices = @transform_2, window_bounds = array<i64: 1, 64>}, {transform_indices = @transform_3, window_bounds = array<i64: 18, 64>}]} {
    %c0_i32 = arith.constant 0 : i32
    %0 = arith.cmpi eq, %arg2, %c0_i32 : i32
    %1 = arith.extui %0 : i1 to i32
    %c0_i32_0 = arith.constant 0 : i32
    %2 = arith.cmpi ne, %1, %c0_i32_0 : i32
    scf.if %2 {
      %cst_10 = arith.constant 0.000000e+00 : f32
      %12 = vector.broadcast %cst_10 : f32 to vector<18x64xf32>
      %c0_11 = arith.constant 0 : index
      %c0_12 = arith.constant 0 : index
      %13 = vector.load %arg7[%c0_11, %c0_12] : memref<18x64xf32, #tpu.memory_space<vmem>>, vector<18x64xf32>
      tpu.vector_store %arg7[%c0_11, %c0_12], %12 {strides = array<i32>} : memref<18x64xf32, #tpu.memory_space<vmem>>, vector<18x64xf32>,
    } else {
    }
    %c0 = arith.constant 0 : index
    %c0_1 = arith.constant 0 : index
    %3 = vector.load %arg7[%c0, %c0_1] : memref<18x64xf32, #tpu.memory_space<vmem>>, vector<18x64xf32>
    %c0_2 = arith.constant 0 : index
    %c0_3 = arith.constant 0 : index
    %4 = vector.load %arg3[%c0_2, %c0_3] : memref<18x512xbf16, #tpu.memory_space<vmem>>, vector<18x512xbf16>
    %c0_4 = arith.constant 0 : index
    %c0_5 = arith.constant 0 : index
    %5 = vector.load %arg4[%c0_4, %c0_5] : memref<512x64xbf16, #tpu.memory_space<vmem>>, vector<512x64xbf16>
    %cst = arith.constant dense<0.000000e+00> : vector<18x64xf32>
    %6 = tpu.matmul %4, %5, %cst {dimension_numbers = #tpu.dot_dimension_numbers<[1], [0], [0], [1], [0, 0, 1, 1], [], []>} : vector<18x512xbf16>, vector<512x64xbf16>, vector<18x64xf32> -> vector<18x64xf32>
    %7 = arith.addf %3, %6 : vector<18x64xf32>
    %c0_6 = arith.constant 0 : index
    %c0_7 = arith.constant 0 : index
    %8 = vector.load %arg7[%c0_6, %c0_7] : memref<18x64xf32, #tpu.memory_space<vmem>>, vector<18x64xf32>
    tpu.vector_store %arg7[%c0_6, %c0_7], %7 {strides = array<i32>} : memref<18x64xf32, #tpu.memory_space<vmem>>, vector<18x64xf32>,
    %c0_i32_8 = arith.constant 0 : i32
    %9 = arith.cmpi eq, %arg2, %c0_i32_8 : i32
    %10 = arith.extui %9 : i1 to i32
    %c0_i32_9 = arith.constant 0 : i32
    %11 = arith.cmpi ne, %10, %c0_i32_9 : i32
    scf.if %11 {
      %c0_10 = arith.constant 0 : index
      %c0_11 = arith.constant 0 : index
      %12 = vector.load %arg7[%c0_10, %c0_11] : memref<18x64xf32, #tpu.memory_space<vmem>>, vector<18x64xf32>
      %c0_12 = arith.constant 0 : index
      %c0_13 = arith.constant 0 : index
      %13 = vector.load %arg5[%c0_12, %c0_13] : memref<1x64xf32, #tpu.memory_space<vmem>>, vector<1x64xf32>
      %14 = vector.broadcast %13 : vector<1x64xf32> to vector<18x64xf32>
      %15 = arith.addf %12, %14 : vector<18x64xf32>
      %cst_14 = arith.constant 0.000000e+00 : f32
      %16 = vector.broadcast %cst_14 : f32 to vector<18x64xf32>
      %17 = arith.maximumf %15, %16 : vector<18x64xf32>
      %18 = arith.truncf %17 : vector<18x64xf32> to vector<18x64xbf16>
      %c0_15 = arith.constant 0 : index
      %c0_16 = arith.constant 0 : index
      %19 = vector.load %arg6[%c0_15, %c0_16] : memref<18x64xbf16, #tpu.memory_space<vmem>>, vector<18x64xbf16>
      tpu.vector_store %arg6[%c0_15, %c0_16], %18 {strides = array<i32>} : memref<18x64xbf16, #tpu.memory_space<vmem>>, vector<18x64xbf16>,
    } else {
    }
    return
  }
  func.func @transform_0(%arg0: i32, %arg1: i32, %arg2: i32) -> (i32, i32) {
    %c0_i32 = arith.constant 0 : i32
    return %arg0, %arg2 : i32, i32
  }
  func.func @transform_1(%arg0: i32, %arg1: i32, %arg2: i32) -> (i32, i32) {
    %c0_i32 = arith.constant 0 : i32
    return %arg2, %arg1 : i32, i32
  }
  func.func @transform_2(%arg0: i32, %arg1: i32, %arg2: i32) -> (i32, i32) {
    %c0_i32 = arith.constant 0 : i32
    %c0_i32_0 = arith.constant 0 : i32
    return %c0_i32, %arg1 : i32, i32
  }
  func.func @transform_3(%arg0: i32, %arg1: i32, %arg2: i32) -> (i32, i32) {
    %c0_i32 = arith.constant 0 : i32
    return %arg0, %arg1 : i32, i32
  }
}

module attributes {stable_mosaic.version = 11 : i64} {
  func.func @_linear_kernel(%arg0: i32, %arg1: i32, %arg2: i32, %arg3: memref<2x576xbf16, #tpu.memory_space<vmem>>, %arg4: memref<576x64xbf16, #tpu.memory_space<vmem>>, %arg5: memref<1x64xf32, #tpu.memory_space<vmem>>, %arg6: memref<2x64xbf16, #tpu.memory_space<vmem>>, %arg7: memref<2x64xf32, #tpu.memory_space<vmem>>) attributes {dimension_semantics = [#tpu.dimension_semantics<parallel>, #tpu.dimension_semantics<parallel>, #tpu.dimension_semantics<arbitrary>], iteration_bounds = array<i64: 1, 1, 1>, scalar_prefetch = 0 : i64, scratch_operands = 1 : i64, tpu.core_type = #tpu.core_type<tc>, window_params = [{transform_indices = @transform_0, window_bounds = array<i64: 2, 576>}, {transform_indices = @transform_1, window_bounds = array<i64: 576, 64>}, {transform_indices = @transform_2, window_bounds = array<i64: 1, 64>}, {transform_indices = @transform_3, window_bounds = array<i64: 2, 64>}]} {
    %c0_i32 = arith.constant 0 : i32
    %0 = arith.cmpi eq, %arg2, %c0_i32 : i32
    %1 = arith.extui %0 : i1 to i32
    %c0_i32_0 = arith.constant 0 : i32
    %2 = arith.cmpi ne, %1, %c0_i32_0 : i32
    scf.if %2 {
      %cst_10 = arith.constant 0.000000e+00 : f32
      %12 = vector.broadcast %cst_10 : f32 to vector<2x64xf32>
      %c0_11 = arith.constant 0 : index
      %c0_12 = arith.constant 0 : index
      %13 = vector.load %arg7[%c0_11, %c0_12] : memref<2x64xf32, #tpu.memory_space<vmem>>, vector<2x64xf32>
      tpu.vector_store %arg7[%c0_11, %c0_12], %12 {strides = array<i32>} : memref<2x64xf32, #tpu.memory_space<vmem>>, vector<2x64xf32>,
    } else {
    }
    %c0 = arith.constant 0 : index
    %c0_1 = arith.constant 0 : index
    %3 = vector.load %arg7[%c0, %c0_1] : memref<2x64xf32, #tpu.memory_space<vmem>>, vector<2x64xf32>
    %c0_2 = arith.constant 0 : index
    %c0_3 = arith.constant 0 : index
    %4 = vector.load %arg3[%c0_2, %c0_3] : memref<2x576xbf16, #tpu.memory_space<vmem>>, vector<2x576xbf16>
    %c0_4 = arith.constant 0 : index
    %c0_5 = arith.constant 0 : index
    %5 = vector.load %arg4[%c0_4, %c0_5] : memref<576x64xbf16, #tpu.memory_space<vmem>>, vector<576x64xbf16>
    %cst = arith.constant dense<0.000000e+00> : vector<2x64xf32>
    %6 = tpu.matmul %4, %5, %cst {dimension_numbers = #tpu.dot_dimension_numbers<[1], [0], [0], [1], [0, 0, 1, 1], [], []>} : vector<2x576xbf16>, vector<576x64xbf16>, vector<2x64xf32> -> vector<2x64xf32>
    %7 = arith.addf %3, %6 : vector<2x64xf32>
    %c0_6 = arith.constant 0 : index
    %c0_7 = arith.constant 0 : index
    %8 = vector.load %arg7[%c0_6, %c0_7] : memref<2x64xf32, #tpu.memory_space<vmem>>, vector<2x64xf32>
    tpu.vector_store %arg7[%c0_6, %c0_7], %7 {strides = array<i32>} : memref<2x64xf32, #tpu.memory_space<vmem>>, vector<2x64xf32>,
    %c0_i32_8 = arith.constant 0 : i32
    %9 = arith.cmpi eq, %arg2, %c0_i32_8 : i32
    %10 = arith.extui %9 : i1 to i32
    %c0_i32_9 = arith.constant 0 : i32
    %11 = arith.cmpi ne, %10, %c0_i32_9 : i32
    scf.if %11 {
      %c0_10 = arith.constant 0 : index
      %c0_11 = arith.constant 0 : index
      %12 = vector.load %arg7[%c0_10, %c0_11] : memref<2x64xf32, #tpu.memory_space<vmem>>, vector<2x64xf32>
      %c0_12 = arith.constant 0 : index
      %c0_13 = arith.constant 0 : index
      %13 = vector.load %arg5[%c0_12, %c0_13] : memref<1x64xf32, #tpu.memory_space<vmem>>, vector<1x64xf32>
      %14 = vector.broadcast %13 : vector<1x64xf32> to vector<2x64xf32>
      %15 = arith.addf %12, %14 : vector<2x64xf32>
      %cst_14 = arith.constant 0.000000e+00 : f32
      %16 = vector.broadcast %cst_14 : f32 to vector<2x64xf32>
      %17 = arith.maximumf %15, %16 : vector<2x64xf32>
      %18 = arith.truncf %17 : vector<2x64xf32> to vector<2x64xbf16>
      %c0_15 = arith.constant 0 : index
      %c0_16 = arith.constant 0 : index
      %19 = vector.load %arg6[%c0_15, %c0_16] : memref<2x64xbf16, #tpu.memory_space<vmem>>, vector<2x64xbf16>
      tpu.vector_store %arg6[%c0_15, %c0_16], %18 {strides = array<i32>} : memref<2x64xbf16, #tpu.memory_space<vmem>>, vector<2x64xbf16>,
    } else {
    }
    return
  }
  func.func @transform_0(%arg0: i32, %arg1: i32, %arg2: i32) -> (i32, i32) {
    %c0_i32 = arith.constant 0 : i32
    return %arg0, %arg2 : i32, i32
  }
  func.func @transform_1(%arg0: i32, %arg1: i32, %arg2: i32) -> (i32, i32) {
    %c0_i32 = arith.constant 0 : i32
    return %arg2, %arg1 : i32, i32
  }
  func.func @transform_2(%arg0: i32, %arg1: i32, %arg2: i32) -> (i32, i32) {
    %c0_i32 = arith.constant 0 : i32
    %c0_i32_0 = arith.constant 0 : i32
    return %c0_i32, %arg1 : i32, i32
  }
  func.func @transform_3(%arg0: i32, %arg1: i32, %arg2: i32) -> (i32, i32) {
    %c0_i32 = arith.constant 0 : i32
    return %arg0, %arg1 : i32, i32
  }
}

module attributes {stable_mosaic.version = 11 : i64} {
  func.func @_linear_kernel(%arg0: i32, %arg1: i32, %arg2: i32, %arg3: memref<2x64xbf16, #tpu.memory_space<vmem>>, %arg4: memref<64x512xbf16, #tpu.memory_space<vmem>>, %arg5: memref<1x512xf32, #tpu.memory_space<vmem>>, %arg6: memref<2x512xf32, #tpu.memory_space<vmem>>, %arg7: memref<2x512xf32, #tpu.memory_space<vmem>>) attributes {dimension_semantics = [#tpu.dimension_semantics<parallel>, #tpu.dimension_semantics<parallel>, #tpu.dimension_semantics<arbitrary>], iteration_bounds = array<i64: 1, 1, 1>, scalar_prefetch = 0 : i64, scratch_operands = 1 : i64, tpu.core_type = #tpu.core_type<tc>, window_params = [{transform_indices = @transform_0, window_bounds = array<i64: 2, 64>}, {transform_indices = @transform_1, window_bounds = array<i64: 64, 512>}, {transform_indices = @transform_2, window_bounds = array<i64: 1, 512>}, {transform_indices = @transform_3, window_bounds = array<i64: 2, 512>}]} {
    %c0_i32 = arith.constant 0 : i32
    %0 = arith.cmpi eq, %arg2, %c0_i32 : i32
    %1 = arith.extui %0 : i1 to i32
    %c0_i32_0 = arith.constant 0 : i32
    %2 = arith.cmpi ne, %1, %c0_i32_0 : i32
    scf.if %2 {
      %cst_10 = arith.constant 0.000000e+00 : f32
      %12 = vector.broadcast %cst_10 : f32 to vector<2x512xf32>
      %c0_11 = arith.constant 0 : index
      %c0_12 = arith.constant 0 : index
      %13 = vector.load %arg7[%c0_11, %c0_12] : memref<2x512xf32, #tpu.memory_space<vmem>>, vector<2x512xf32>
      tpu.vector_store %arg7[%c0_11, %c0_12], %12 {strides = array<i32>} : memref<2x512xf32, #tpu.memory_space<vmem>>, vector<2x512xf32>,
    } else {
    }
    %c0 = arith.constant 0 : index
    %c0_1 = arith.constant 0 : index
    %3 = vector.load %arg7[%c0, %c0_1] : memref<2x512xf32, #tpu.memory_space<vmem>>, vector<2x512xf32>
    %c0_2 = arith.constant 0 : index
    %c0_3 = arith.constant 0 : index
    %4 = vector.load %arg3[%c0_2, %c0_3] : memref<2x64xbf16, #tpu.memory_space<vmem>>, vector<2x64xbf16>
    %c0_4 = arith.constant 0 : index
    %c0_5 = arith.constant 0 : index
    %5 = vector.load %arg4[%c0_4, %c0_5] : memref<64x512xbf16, #tpu.memory_space<vmem>>, vector<64x512xbf16>
    %cst = arith.constant dense<0.000000e+00> : vector<2x512xf32>
    %6 = tpu.matmul %4, %5, %cst {dimension_numbers = #tpu.dot_dimension_numbers<[1], [0], [0], [1], [0, 0, 1, 1], [], []>} : vector<2x64xbf16>, vector<64x512xbf16>, vector<2x512xf32> -> vector<2x512xf32>
    %7 = arith.addf %3, %6 : vector<2x512xf32>
    %c0_6 = arith.constant 0 : index
    %c0_7 = arith.constant 0 : index
    %8 = vector.load %arg7[%c0_6, %c0_7] : memref<2x512xf32, #tpu.memory_space<vmem>>, vector<2x512xf32>
    tpu.vector_store %arg7[%c0_6, %c0_7], %7 {strides = array<i32>} : memref<2x512xf32, #tpu.memory_space<vmem>>, vector<2x512xf32>,
    %c0_i32_8 = arith.constant 0 : i32
    %9 = arith.cmpi eq, %arg2, %c0_i32_8 : i32
    %10 = arith.extui %9 : i1 to i32
    %c0_i32_9 = arith.constant 0 : i32
    %11 = arith.cmpi ne, %10, %c0_i32_9 : i32
    scf.if %11 {
      %c0_10 = arith.constant 0 : index
      %c0_11 = arith.constant 0 : index
      %12 = vector.load %arg7[%c0_10, %c0_11] : memref<2x512xf32, #tpu.memory_space<vmem>>, vector<2x512xf32>
      %c0_12 = arith.constant 0 : index
      %c0_13 = arith.constant 0 : index
      %13 = vector.load %arg5[%c0_12, %c0_13] : memref<1x512xf32, #tpu.memory_space<vmem>>, vector<1x512xf32>
      %14 = vector.broadcast %13 : vector<1x512xf32> to vector<2x512xf32>
      %15 = arith.addf %12, %14 : vector<2x512xf32>
      %cst_14 = arith.constant 0.000000e+00 : f32
      %16 = vector.broadcast %cst_14 : f32 to vector<2x512xf32>
      %17 = arith.maximumf %15, %16 : vector<2x512xf32>
      %c0_15 = arith.constant 0 : index
      %c0_16 = arith.constant 0 : index
      %18 = vector.load %arg6[%c0_15, %c0_16] : memref<2x512xf32, #tpu.memory_space<vmem>>, vector<2x512xf32>
      tpu.vector_store %arg6[%c0_15, %c0_16], %17 {strides = array<i32>} : memref<2x512xf32, #tpu.memory_space<vmem>>, vector<2x512xf32>,
    } else {
    }
    return
  }
  func.func @transform_0(%arg0: i32, %arg1: i32, %arg2: i32) -> (i32, i32) {
    %c0_i32 = arith.constant 0 : i32
    return %arg0, %arg2 : i32, i32
  }
  func.func @transform_1(%arg0: i32, %arg1: i32, %arg2: i32) -> (i32, i32) {
    %c0_i32 = arith.constant 0 : i32
    return %arg2, %arg1 : i32, i32
  }
  func.func @transform_2(%arg0: i32, %arg1: i32, %arg2: i32) -> (i32, i32) {
    %c0_i32 = arith.constant 0 : i32
    %c0_i32_0 = arith.constant 0 : i32
    return %c0_i32, %arg1 : i32, i32
  }
  func.func @transform_3(%arg0: i32, %arg1: i32, %arg2: i32) -> (i32, i32) {
    %c0_i32 = arith.constant 0 : i32
    return %arg0, %arg1 : i32, i32
  }
}

module attributes {stable_mosaic.version = 11 : i64} {
  func.func @_linear_kernel(%arg0: i32, %arg1: i32, %arg2: i32, %arg3: memref<2x512xf32, #tpu.memory_space<vmem>>, %arg4: memref<512x128xf32, #tpu.memory_space<vmem>>, %arg5: memref<1x128xf32, #tpu.memory_space<vmem>>, %arg6: memref<2x128xf32, #tpu.memory_space<vmem>>, %arg7: memref<2x128xf32, #tpu.memory_space<vmem>>) attributes {dimension_semantics = [#tpu.dimension_semantics<parallel>, #tpu.dimension_semantics<parallel>, #tpu.dimension_semantics<arbitrary>], iteration_bounds = array<i64: 1, 1, 1>, scalar_prefetch = 0 : i64, scratch_operands = 1 : i64, tpu.core_type = #tpu.core_type<tc>, window_params = [{transform_indices = @transform_0, window_bounds = array<i64: 2, 512>}, {transform_indices = @transform_1, window_bounds = array<i64: 512, 128>}, {transform_indices = @transform_2, window_bounds = array<i64: 1, 128>}, {transform_indices = @transform_3, window_bounds = array<i64: 2, 128>}]} {
    %c0_i32 = arith.constant 0 : i32
    %0 = arith.cmpi eq, %arg2, %c0_i32 : i32
    %1 = arith.extui %0 : i1 to i32
    %c0_i32_0 = arith.constant 0 : i32
    %2 = arith.cmpi ne, %1, %c0_i32_0 : i32
    scf.if %2 {
      %cst_10 = arith.constant 0.000000e+00 : f32
      %12 = vector.broadcast %cst_10 : f32 to vector<2x128xf32>
      %c0_11 = arith.constant 0 : index
      %c0_12 = arith.constant 0 : index
      %13 = vector.load %arg7[%c0_11, %c0_12] : memref<2x128xf32, #tpu.memory_space<vmem>>, vector<2x128xf32>
      tpu.vector_store %arg7[%c0_11, %c0_12], %12 {strides = array<i32>} : memref<2x128xf32, #tpu.memory_space<vmem>>, vector<2x128xf32>,
    } else {
    }
    %c0 = arith.constant 0 : index
    %c0_1 = arith.constant 0 : index
    %3 = vector.load %arg7[%c0, %c0_1] : memref<2x128xf32, #tpu.memory_space<vmem>>, vector<2x128xf32>
    %c0_2 = arith.constant 0 : index
    %c0_3 = arith.constant 0 : index
    %4 = vector.load %arg3[%c0_2, %c0_3] : memref<2x512xf32, #tpu.memory_space<vmem>>, vector<2x512xf32>
    %c0_4 = arith.constant 0 : index
    %c0_5 = arith.constant 0 : index
    %5 = vector.load %arg4[%c0_4, %c0_5] : memref<512x128xf32, #tpu.memory_space<vmem>>, vector<512x128xf32>
    %cst = arith.constant dense<0.000000e+00> : vector<2x128xf32>
    %6 = tpu.matmul %4, %5, %cst {dimension_numbers = #tpu.dot_dimension_numbers<[1], [0], [0], [1], [0, 0, 1, 1], [], []>} : vector<2x512xf32>, vector<512x128xf32>, vector<2x128xf32> -> vector<2x128xf32>
    %7 = arith.addf %3, %6 : vector<2x128xf32>
    %c0_6 = arith.constant 0 : index
    %c0_7 = arith.constant 0 : index
    %8 = vector.load %arg7[%c0_6, %c0_7] : memref<2x128xf32, #tpu.memory_space<vmem>>, vector<2x128xf32>
    tpu.vector_store %arg7[%c0_6, %c0_7], %7 {strides = array<i32>} : memref<2x128xf32, #tpu.memory_space<vmem>>, vector<2x128xf32>,
    %c0_i32_8 = arith.constant 0 : i32
    %9 = arith.cmpi eq, %arg2, %c0_i32_8 : i32
    %10 = arith.extui %9 : i1 to i32
    %c0_i32_9 = arith.constant 0 : i32
    %11 = arith.cmpi ne, %10, %c0_i32_9 : i32
    scf.if %11 {
      %c0_10 = arith.constant 0 : index
      %c0_11 = arith.constant 0 : index
      %12 = vector.load %arg7[%c0_10, %c0_11] : memref<2x128xf32, #tpu.memory_space<vmem>>, vector<2x128xf32>
      %c0_12 = arith.constant 0 : index
      %c0_13 = arith.constant 0 : index
      %13 = vector.load %arg5[%c0_12, %c0_13] : memref<1x128xf32, #tpu.memory_space<vmem>>, vector<1x128xf32>
      %14 = vector.broadcast %13 : vector<1x128xf32> to vector<2x128xf32>
      %15 = arith.addf %12, %14 : vector<2x128xf32>
      %c0_14 = arith.constant 0 : index
      %c0_15 = arith.constant 0 : index
      %16 = vector.load %arg6[%c0_14, %c0_15] : memref<2x128xf32, #tpu.memory_space<vmem>>, vector<2x128xf32>
      tpu.vector_store %arg6[%c0_14, %c0_15], %15 {strides = array<i32>} : memref<2x128xf32, #tpu.memory_space<vmem>>, vector<2x128xf32>,
    } else {
    }
    return
  }
  func.func @transform_0(%arg0: i32, %arg1: i32, %arg2: i32) -> (i32, i32) {
    %c0_i32 = arith.constant 0 : i32
    return %arg0, %arg2 : i32, i32
  }
  func.func @transform_1(%arg0: i32, %arg1: i32, %arg2: i32) -> (i32, i32) {
    %c0_i32 = arith.constant 0 : i32
    return %arg2, %arg1 : i32, i32
  }
  func.func @transform_2(%arg0: i32, %arg1: i32, %arg2: i32) -> (i32, i32) {
    %c0_i32 = arith.constant 0 : i32
    %c0_i32_0 = arith.constant 0 : i32
    return %c0_i32, %arg1 : i32, i32
  }
  func.func @transform_3(%arg0: i32, %arg1: i32, %arg2: i32) -> (i32, i32) {
    %c0_i32 = arith.constant 0 : i32
    return %arg0, %arg1 : i32, i32
  }
}

</mosaic_0001>

<llo_original>
// kernel: _lambda_.5
$region0: #{_lambda_.5}
  #allocation0 [shape = 'u32[]', space=smem, size = 0x4, offset = 0x4, fixed_abs, tag = 'smem constant byte address 0x4 - core index']
  #allocation1 [shape = 'u32[144,128]{1,0:T(1,128)}', space=vmem, size = 0x12000, scoped, tag = 'internal scratch']
  #allocation2 [shape = 'f32[128,32]{1,0:T(8,128)}', space=vmem, size = 0x10000, scoped, tag = 'scratch operand']
  %s0 = inlined_call_operand.vmem [shape: bf16[128,256], index: 0, kind: input, shape index: {}]
  %s1 = inlined_call_operand.vmem [shape: bf16[256,32], index: 1, kind: input, shape index: {}]
  %s2 = inlined_call_operand.vmem [shape: f32[1,32], index: 2, kind: input, shape index: {}]
  %s3 = inlined_call_operand.vmem [shape: bf16[128,32], index: 3, kind: output, shape index: {}]
  %s4 = sld [smem:[#allocation0]]
  $region30: #{_lambda_.5} parent=0
    _
  %s6 = ssub.s32 1, %s4
  %s7 = scalar_select 0, %s6, %s4
  // Predicated region
  $region2: #{_lambda_.5} parent=0 // pred_check
    _
  $region3: #{_lambda_.5} parent=0 // pred_check_branch
    %9 = sbr.rel (0) target = $region5
  $region4: #{_lambda_.5} parent=0 // pred_region
    _
  $region5: #{_lambda_.5} parent=0 // pred_fallthru
    _
  // Predicated region
  $region6: #{_lambda_.5} parent=0 // pred_check
    _
  $region7: #{_lambda_.5} parent=0 // pred_check_branch
    %11 = sbr.rel (0) target = $region9
  $region8: #{_lambda_.5} parent=0 // pred_region
    _
  $region9: #{_lambda_.5} parent=0 // pred_fallthru
    _
  // Predicated region
  $region10: #{_lambda_.5} parent=0 // pred_check
    _
  $region11: #{_lambda_.5} parent=0 // pred_check_branch
    %13 = sbr.rel (0) target = $region13
  $region12: #{_lambda_.5} parent=0 // pred_region
    _
  $region13: #{_lambda_.5} parent=0 // pred_fallthru
    _
  %p15 = scmp.eq.s32.totalorder 0, 0
  // Predicated region
  $region14: #{_lambda_.5} parent=0 // pred_check
    %p16 = pneg %p15
  $region15: #{_lambda_.5} parent=0 // pred_check_branch
    %18 = sbr.rel (%p16) target = $region17
  $region16: #{_lambda_.5} parent=0 // pred_region
    %vm19 = vcmask 261120
    %20 = vst.msk [vmem:[#allocation2] sm:$0xff] %vm19, 0.0
    %21 = vst.msk [vmem:[#allocation2 + $0x8] sm:$0xff] %vm19, 0.0
    %22 = vst.msk [vmem:[#allocation2 + $0x10] sm:$0xff] %vm19, 0.0
    %23 = vst.msk [vmem:[#allocation2 + $0x18] sm:$0xff] %vm19, 0.0
    %24 = vst.msk [vmem:[#allocation2 + $0x20] sm:$0xff] %vm19, 0.0
    %25 = vst.msk [vmem:[#allocation2 + $0x28] sm:$0xff] %vm19, 0.0
    %26 = vst.msk [vmem:[#allocation2 + $0x30] sm:$0xff] %vm19, 0.0
    %27 = vst.msk [vmem:[#allocation2 + $0x38] sm:$0xff] %vm19, 0.0
    %28 = vst.msk [vmem:[#allocation2 + $0x40] sm:$0xff] %vm19, 0.0
    %29 = vst.msk [vmem:[#allocation2 + $0x48] sm:$0xff] %vm19, 0.0
    %30 = vst.msk [vmem:[#allocation2 + $0x50] sm:$0xff] %vm19, 0.0
    %31 = vst.msk [vmem:[#allocation2 + $0x58] sm:$0xff] %vm19, 0.0
    %32 = vst.msk [vmem:[#allocation2 + $0x60] sm:$0xff] %vm19, 0.0
    %33 = vst.msk [vmem:[#allocation2 + $0x68] sm:$0xff] %vm19, 0.0
    %34 = vst.msk [vmem:[#allocation2 + $0x70] sm:$0xff] %vm19, 0.0
    %35 = vst.msk [vmem:[#allocation2 + $0x78] sm:$0xff] %vm19, 0.0
  $region17: #{_lambda_.5} parent=0 // pred_fallthru
    _
  %v36 = vld [vmem:[#allocation2] sm:$0xff]
  %v37 = vld [vmem:[#allocation2 + $0x8] sm:$0xff]
  %v38 = vld [vmem:[#allocation2 + $0x10] sm:$0xff]
  %v39 = vld [vmem:[#allocation2 + $0x18] sm:$0xff]
  %v40 = vld [vmem:[#allocation2 + $0x20] sm:$0xff]
  %v41 = vld [vmem:[#allocation2 + $0x28] sm:$0xff]
  %v42 = vld [vmem:[#allocation2 + $0x30] sm:$0xff]
  %v43 = vld [vmem:[#allocation2 + $0x38] sm:$0xff]
  %v44 = vld [vmem:[#allocation2 + $0x40] sm:$0xff]
  %v45 = vld [vmem:[#allocation2 + $0x48] sm:$0xff]
  %v46 = vld [vmem:[#allocation2 + $0x50] sm:$0xff]
  %v47 = vld [vmem:[#allocation2 + $0x58] sm:$0xff]
  %v48 = vld [vmem:[#allocation2 + $0x60] sm:$0xff]
  %v49 = vld [vmem:[#allocation2 + $0x68] sm:$0xff]
  %v50 = vld [vmem:[#allocation2 + $0x70] sm:$0xff]
  %v51 = vld [vmem:[#allocation2 + $0x78] sm:$0xff]
  %v52 = vld [vmem:[%s0] sm:$0xff]
  %v53 = vld [vmem:[%s0 + $0x8] sm:$0xff]
  %v54 = vld [vmem:[%s0 + $0x10] sm:$0xff]
  %v55 = vld [vmem:[%s0 + $0x18] sm:$0xff]
  %v56 = vld [vmem:[%s0 + $0x20] sm:$0xff]
  %v57 = vld [vmem:[%s0 + $0x28] sm:$0xff]
  %v58 = vld [vmem:[%s0 + $0x30] sm:$0xff]
  %v59 = vld [vmem:[%s0 + $0x38] sm:$0xff]
  %v60 = vld [vmem:[%s0 + $0x40] sm:$0xff]
  %v61 = vld [vmem:[%s0 + $0x48] sm:$0xff]
  %v62 = vld [vmem:[%s0 + $0x50] sm:$0xff]
  %v63 = vld [vmem:[%s0 + $0x58] sm:$0xff]
  %v64 = vld [vmem:[%s0 + $0x60] sm:$0xff]
  %v65 = vld [vmem:[%s0 + $0x68] sm:$0xff]
  %v66 = vld [vmem:[%s0 + $0x70] sm:$0xff]
  %v67 = vld [vmem:[%s0 + $0x78] sm:$0xff]
  %v68 = vld [vmem:[%s1] sm:$0xf]
  %v69 = vld [vmem:[%s1 + $0x4] sm:$0xf]
  %v70 = vld [vmem:[%s1 + $0x8] sm:$0xf]
  %v71 = vld [vmem:[%s1 + $0xc] sm:$0xf]
  %v72 = vld [vmem:[%s1 + $0x10] sm:$0xf]
  %v73 = vld [vmem:[%s1 + $0x14] sm:$0xf]
  %v74 = vld [vmem:[%s1 + $0x18] sm:$0xf]
  %v75 = vld [vmem:[%s1 + $0x1c] sm:$0xf]
  %v76 = vld [vmem:[%s1 + $0x20] sm:$0xf]
  %v77 = vld [vmem:[%s1 + $0x24] sm:$0xf]
  %v78 = vld [vmem:[%s1 + $0x28] sm:$0xf]
  %v79 = vld [vmem:[%s1 + $0x2c] sm:$0xf]
  %v80 = vld [vmem:[%s1 + $0x30] sm:$0xf]
  %v81 = vld [vmem:[%s1 + $0x34] sm:$0xf]
  %v82 = vld [vmem:[%s1 + $0x38] sm:$0xf]
  %v83 = vld [vmem:[%s1 + $0x3c] sm:$0xf]
  %v84 = vld [vmem:[%s1 + $0x40] sm:$0xf]
  %v85 = vld [vmem:[%s1 + $0x44] sm:$0xf]
  %v86 = vld [vmem:[%s1 + $0x48] sm:$0xf]
  %v87 = vld [vmem:[%s1 + $0x4c] sm:$0xf]
  %v88 = vld [vmem:[%s1 + $0x50] sm:$0xf]
  %v89 = vld [vmem:[%s1 + $0x54] sm:$0xf]
  %v90 = vld [vmem:[%s1 + $0x58] sm:$0xf]
  %v91 = vld [vmem:[%s1 + $0x5c] sm:$0xf]
  %v92 = vld [vmem:[%s1 + $0x60] sm:$0xf]
  %v93 = vld [vmem:[%s1 + $0x64] sm:$0xf]
  %v94 = vld [vmem:[%s1 + $0x68] sm:$0xf]
  %v95 = vld [vmem:[%s1 + $0x6c] sm:$0xf]
  %v96 = vld [vmem:[%s1 + $0x70] sm:$0xf]
  %v97 = vld [vmem:[%s1 + $0x74] sm:$0xf]
  %v98 = vld [vmem:[%s1 + $0x78] sm:$0xf]
  %v99 = vld [vmem:[%s1 + $0x7c] sm:$0xf]
  %v116 = vunpack.c.l.b16 %v52
  %v117 = vunpack.c.h.b16 %v52
  %v118 = vunpack.c.l.b16 %v53
  %v119 = vunpack.c.h.b16 %v53
  %v120 = vunpack.c.l.b16 %v54
  %v121 = vunpack.c.h.b16 %v54
  %v122 = vunpack.c.l.b16 %v55
  %v123 = vunpack.c.h.b16 %v55
  %v124 = vunpack.c.l.b16 %v56
  %v125 = vunpack.c.h.b16 %v56
  %v126 = vunpack.c.l.b16 %v57
  %v127 = vunpack.c.h.b16 %v57
  %v128 = vunpack.c.l.b16 %v58
  %v129 = vunpack.c.h.b16 %v58
  %v130 = vunpack.c.l.b16 %v59
  %v131 = vunpack.c.h.b16 %v59
  %v132 = vunpack.c.l.b16 %v60
  %v133 = vunpack.c.h.b16 %v60
  %v134 = vunpack.c.l.b16 %v61
  %v135 = vunpack.c.h.b16 %v61
  %v136 = vunpack.c.l.b16 %v62
  %v137 = vunpack.c.h.b16 %v62
  %v138 = vunpack.c.l.b16 %v63
  %v139 = vunpack.c.h.b16 %v63
  %v140 = vunpack.c.l.b16 %v64
  %v141 = vunpack.c.h.b16 %v64
  %v142 = vunpack.c.l.b16 %v65
  %v143 = vunpack.c.h.b16 %v65
  %v144 = vunpack.c.l.b16 %v66
  %v145 = vunpack.c.h.b16 %v66
  %v146 = vunpack.c.l.b16 %v67
  %v147 = vunpack.c.h.b16 %v67
  %v148 = vpack.c.b16 %v118, %v116
  %v149 = vpack.c.b16 %v119, %v117
  %v150 = vpack.c.b16 %v122, %v120
  %v151 = vpack.c.b16 %v123, %v121
  %v152 = vpack.c.b16 %v126, %v124
  %v153 = vpack.c.b16 %v127, %v125
  %v154 = vpack.c.b16 %v130, %v128
  %v155 = vpack.c.b16 %v131, %v129
  %v156 = vpack.c.b16 %v134, %v132
  %v157 = vpack.c.b16 %v135, %v133
  %v158 = vpack.c.b16 %v138, %v136
  %v159 = vpack.c.b16 %v139, %v137
  %v160 = vpack.c.b16 %v142, %v140
  %v161 = vpack.c.b16 %v143, %v141
  %v162 = vpack.c.b16 %v146, %v144
  %v163 = vpack.c.b16 %v147, %v145
  %v212 = vunpack.c.l.b16 %v68
  %v213 = vunpack.c.l.b16 %v69
  %v214 = vunpack.c.l.b16 %v70
  %v215 = vunpack.c.l.b16 %v71
  %v216 = vunpack.c.l.b16 %v72
  %v217 = vunpack.c.l.b16 %v73
  %v218 = vunpack.c.l.b16 %v74
  %v219 = vunpack.c.l.b16 %v75
  %v220 = vunpack.c.l.b16 %v76
  %v221 = vunpack.c.l.b16 %v77
  %v222 = vunpack.c.l.b16 %v78
  %v223 = vunpack.c.l.b16 %v79
  %v224 = vunpack.c.l.b16 %v80
  %v225 = vunpack.c.l.b16 %v81
  %v226 = vunpack.c.l.b16 %v82
  %v227 = vunpack.c.l.b16 %v83
  %v228 = vunpack.c.l.b16 %v84
  %v229 = vunpack.c.l.b16 %v85
  %v230 = vunpack.c.l.b16 %v86
  %v231 = vunpack.c.l.b16 %v87
  %v232 = vunpack.c.l.b16 %v88
  %v233 = vunpack.c.l.b16 %v89
  %v234 = vunpack.c.l.b16 %v90
  %v235 = vunpack.c.l.b16 %v91
  %v236 = vunpack.c.l.b16 %v92
  %v237 = vunpack.c.l.b16 %v93
  %v238 = vunpack.c.l.b16 %v94
  %v239 = vunpack.c.l.b16 %v95
  %v240 = vunpack.c.l.b16 %v96
  %v241 = vunpack.c.l.b16 %v97
  %v242 = vunpack.c.l.b16 %v98
  %v243 = vunpack.c.l.b16 %v99
  %v244 = vpack.c.b16 %v213, %v212
  %v245 = vpack.c.b16 %v215, %v214
  %v246 = vpack.c.b16 %v217, %v216
  %v247 = vpack.c.b16 %v219, %v218
  %v248 = vpack.c.b16 %v221, %v220
  %v249 = vpack.c.b16 %v223, %v222
  %v250 = vpack.c.b16 %v225, %v224
  %v251 = vpack.c.b16 %v227, %v226
  %v252 = vpack.c.b16 %v229, %v228
  %v253 = vpack.c.b16 %v231, %v230
  %v254 = vpack.c.b16 %v233, %v232
  %v255 = vpack.c.b16 %v235, %v234
  %v256 = vpack.c.b16 %v237, %v236
  %v257 = vpack.c.b16 %v239, %v238
  %v258 = vpack.c.b16 %v241, %v240
  %v259 = vpack.c.b16 %v243, %v242
  %276 = vmatprep.subr.bf16.mxu0 0
  %277 = vmatpush1.bf16.msra.mxu0 %v251
  %278 = vmatprep.subr.bf16.mxu0 0
  %279 = vmatpush1.bf16.msra.mxu0 %v250
  %280 = vmatprep.subr.bf16.mxu0 0
  %281 = vmatpush1.bf16.msra.mxu0 %v249
  %282 = vmatprep.subr.bf16.mxu0 0
  %283 = vmatpush1.bf16.msra.mxu0 %v248
  %284 = vmatprep.subr.bf16.mxu0 0
  %285 = vmatpush1.bf16.msra.mxu0 %v247
  %286 = vmatprep.subr.bf16.mxu0 0
  %287 = vmatpush1.bf16.msra.mxu0 %v246
  %288 = vmatprep.subr.bf16.mxu0 0
  %289 = vmatpush1.bf16.msra.mxu0 %v245
  %290 = vmatprep.subr.bf16.mxu0 0
  %291 = vmatpush1.bf16.msra.mxu0 %v244
  %292 = vmatprep.subr.bf16.mxu0 0
  %293 = vmatpush2.bf16.msra.mxu0 %v259
  %294 = vmatprep.subr.bf16.mxu0 0
  %295 = vmatpush2.bf16.msra.mxu0 %v258
  %296 = vmatprep.subr.bf16.mxu0 0
  %297 = vmatpush2.bf16.msra.mxu0 %v257
  %298 = vmatprep.subr.bf16.mxu0 0
  %299 = vmatpush2.bf16.msra.mxu0 %v256
  %300 = vmatprep.subr.bf16.mxu0 0
  %301 = vmatpush2.bf16.msra.mxu0 %v255
  %302 = vmatprep.subr.bf16.mxu0 0
  %303 = vmatpush2.bf16.msra.mxu0 %v254
  %304 = vmatprep.subr.bf16.mxu0 0
  %305 = vmatpush2.bf16.msra.mxu0 %v253
  %306 = vmatprep.subr.bf16.mxu0 0
  %307 = vmatpush2.bf16.msra.mxu0 %v252
  %308 = vmatprep.mubr.bf16.mxu0 %v149
  %309 = vmatmul.mubr.bf16.gmra.mxu0 %v148
  %v310 = vpop.f32.mrf.mxu0
  %v311 = vadd.f32 0.0, %v310
  %v312 = vpop.f32.mrf.mxu0
  %v313 = vpop.f32.mrf.mxu0
  %v314 = vadd.f32 0.0, %v313
  %v315 = vpop.f32.mrf.mxu0
  %316 = vmatprep.mubr.bf16.mxu0 %v151
  %317 = vmatmul.mubr.bf16.gmra.mxu0 %v150
  %v318 = vpop.f32.mrf.mxu0
  %v319 = vadd.f32 0.0, %v318
  %v320 = vpop.f32.mrf.mxu0
  %v321 = vpop.f32.mrf.mxu0
  %v322 = vadd.f32 0.0, %v321
  %v323 = vpop.f32.mrf.mxu0
  %324 = vmatprep.mubr.bf16.mxu0 %v153
  %325 = vmatmul.mubr.bf16.gmra.mxu0 %v152
  %v326 = vpop.f32.mrf.mxu0
  %v327 = vadd.f32 0.0, %v326
  %v328 = vpop.f32.mrf.mxu0
  %v329 = vpop.f32.mrf.mxu0
  %v330 = vadd.f32 0.0, %v329
  %v331 = vpop.f32.mrf.mxu0
  %332 = vmatprep.mubr.bf16.mxu0 %v155
  %333 = vmatmul.mubr.bf16.gmra.mxu0 %v154
  %v334 = vpop.f32.mrf.mxu0
  %v335 = vadd.f32 0.0, %v334
  %v336 = vpop.f32.mrf.mxu0
  %v337 = vpop.f32.mrf.mxu0
  %v338 = vadd.f32 0.0, %v337
  %v339 = vpop.f32.mrf.mxu0
  %340 = vmatprep.mubr.bf16.mxu0 %v157
  %341 = vmatmul.mubr.bf16.gmra.mxu0 %v156
  %v342 = vpop.f32.mrf.mxu0
  %v343 = vadd.f32 0.0, %v342
  %v344 = vpop.f32.mrf.mxu0
  %v345 = vpop.f32.mrf.mxu0
  %v346 = vadd.f32 0.0, %v345
  %v347 = vpop.f32.mrf.mxu0
  %348 = vmatprep.mubr.bf16.mxu0 %v159
  %349 = vmatmul.mubr.bf16.gmra.mxu0 %v158
  %v350 = vpop.f32.mrf.mxu0
  %v351 = vadd.f32 0.0, %v350
  %v352 = vpop.f32.mrf.mxu0
  %v353 = vpop.f32.mrf.mxu0
  %v354 = vadd.f32 0.0, %v353
  %v355 = vpop.f32.mrf.mxu0
  %356 = vmatprep.mubr.bf16.mxu0 %v161
  %357 = vmatmul.mubr.bf16.gmra.mxu0 %v160
  %v358 = vpop.f32.mrf.mxu0
  %v359 = vadd.f32 0.0, %v358
  %v360 = vpop.f32.mrf.mxu0
  %v361 = vpop.f32.mrf.mxu0
  %v362 = vadd.f32 0.0, %v361
  %v363 = vpop.f32.mrf.mxu0
  %364 = vmatprep.mubr.bf16.mxu0 %v163
  %365 = vmatmul.mubr.bf16.gmra.mxu0 %v162
  %v366 = vpop.f32.mrf.mxu0
  %v367 = vadd.f32 0.0, %v366
  %v368 = vpop.f32.mrf.mxu0
  %v369 = vpop.f32.mrf.mxu0
  %v370 = vadd.f32 0.0, %v369
  %v371 = vpop.f32.mrf.mxu0
  %372 = vdwg.mxu0
  %v373 = vadd.f32 %v36, %v311
  %v374 = vadd.f32 %v37, %v314
  %v375 = vadd.f32 %v38, %v319
  %v376 = vadd.f32 %v39, %v322
  %v377 = vadd.f32 %v40, %v327
  %v378 = vadd.f32 %v41, %v330
  %v379 = vadd.f32 %v42, %v335
  %v380 = vadd.f32 %v43, %v338
  %v381 = vadd.f32 %v44, %v343
  %v382 = vadd.f32 %v45, %v346
  %v383 = vadd.f32 %v46, %v351
  %v384 = vadd.f32 %v47, %v354
  %v385 = vadd.f32 %v48, %v359
  %v386 = vadd.f32 %v49, %v362
  %v387 = vadd.f32 %v50, %v367
  %v388 = vadd.f32 %v51, %v370
  %vm389 = vcmask 261120
  %390 = vst.msk [vmem:[#allocation2] sm:$0xff] %vm389, %v373
  %391 = vst.msk [vmem:[#allocation2 + $0x8] sm:$0xff] %vm389, %v374
  %392 = vst.msk [vmem:[#allocation2 + $0x10] sm:$0xff] %vm389, %v375
  %393 = vst.msk [vmem:[#allocation2 + $0x18] sm:$0xff] %vm389, %v376
  %394 = vst.msk [vmem:[#allocation2 + $0x20] sm:$0xff] %vm389, %v377
  %395 = vst.msk [vmem:[#allocation2 + $0x28] sm:$0xff] %vm389, %v378
  %396 = vst.msk [vmem:[#allocation2 + $0x30] sm:$0xff] %vm389, %v379
  %397 = vst.msk [vmem:[#allocation2 + $0x38] sm:$0xff] %vm389, %v380
  %398 = vst.msk [vmem:[#allocation2 + $0x40] sm:$0xff] %vm389, %v381
  %399 = vst.msk [vmem:[#allocation2 + $0x48] sm:$0xff] %vm389, %v382
  %400 = vst.msk [vmem:[#allocation2 + $0x50] sm:$0xff] %vm389, %v383
  %401 = vst.msk [vmem:[#allocation2 + $0x58] sm:$0xff] %vm389, %v384
  %402 = vst.msk [vmem:[#allocation2 + $0x60] sm:$0xff] %vm389, %v385
  %403 = vst.msk [vmem:[#allocation2 + $0x68] sm:$0xff] %vm389, %v386
  %404 = vst.msk [vmem:[#allocation2 + $0x70] sm:$0xff] %vm389, %v387
  %405 = vst.msk [vmem:[#allocation2 + $0x78] sm:$0xff] %vm389, %v388
  // Predicated region
  $region18: #{_lambda_.5} parent=0 // pred_check
    %p406 = pneg %p15
  $region19: #{_lambda_.5} parent=0 // pred_check_branch
    %408 = sbr.rel (%p406) target = $region21
  $region20: #{_lambda_.5} parent=0 // pred_region
    %v409 = vld [vmem:[#allocation2] sm:$0xff]
    %v410 = vld [vmem:[#allocation2 + $0x8] sm:$0xff]
    %v411 = vld [vmem:[#allocation2 + $0x10] sm:$0xff]
    %v412 = vld [vmem:[#allocation2 + $0x18] sm:$0xff]
    %v413 = vld [vmem:[#allocation2 + $0x20] sm:$0xff]
    %v414 = vld [vmem:[#allocation2 + $0x28] sm:$0xff]
    %v415 = vld [vmem:[#allocation2 + $0x30] sm:$0xff]
    %v416 = vld [vmem:[#allocation2 + $0x38] sm:$0xff]
    %v417 = vld [vmem:[#allocation2 + $0x40] sm:$0xff]
    %v418 = vld [vmem:[#allocation2 + $0x48] sm:$0xff]
    %v419 = vld [vmem:[#allocation2 + $0x50] sm:$0xff]
    %v420 = vld [vmem:[#allocation2 + $0x58] sm:$0xff]
    %v421 = vld [vmem:[#allocation2 + $0x60] sm:$0xff]
    %v422 = vld [vmem:[#allocation2 + $0x68] sm:$0xff]
    %v423 = vld [vmem:[#allocation2 + $0x70] sm:$0xff]
    %v424 = vld [vmem:[#allocation2 + $0x78] sm:$0xff]
    %v425 = vld [vmem:[%s2] sm:$0x1]
    %v427 = vlaneseq
    %v428 = vshrl.u32 %v427, 7
    %v429 = vsub.s32 0, %v428
    %v430 = vrot.slane %v425, %v429
    %v432 = vadd.f32 %v409, %v430
    %v433 = vadd.f32 %v410, %v430
    %v434 = vadd.f32 %v411, %v430
    %v435 = vadd.f32 %v412, %v430
    %v436 = vadd.f32 %v413, %v430
    %v437 = vadd.f32 %v414, %v430
    %v438 = vadd.f32 %v415, %v430
    %v439 = vadd.f32 %v416, %v430
    %v440 = vadd.f32 %v417, %v430
    %v441 = vadd.f32 %v418, %v430
    %v442 = vadd.f32 %v419, %v430
    %v443 = vadd.f32 %v420, %v430
    %v444 = vadd.f32 %v421, %v430
    %v445 = vadd.f32 %v422, %v430
    %v446 = vadd.f32 %v423, %v430
    %v447 = vadd.f32 %v424, %v430
    %v448 = vmax.f32 %v432, 0.0
    %v449 = vmax.f32 %v433, 0.0
    %v450 = vmax.f32 %v434, 0.0
    %v451 = vmax.f32 %v435, 0.0
    %v452 = vmax.f32 %v436, 0.0
    %v453 = vmax.f32 %v437, 0.0
    %v454 = vmax.f32 %v438, 0.0
    %v455 = vmax.f32 %v439, 0.0
    %v456 = vmax.f32 %v440, 0.0
    %v457 = vmax.f32 %v441, 0.0
    %v458 = vmax.f32 %v442, 0.0
    %v459 = vmax.f32 %v443, 0.0
    %v460 = vmax.f32 %v444, 0.0
    %v461 = vmax.f32 %v445, 0.0
    %v462 = vmax.f32 %v446, 0.0
    %v463 = vmax.f32 %v447, 0.0
    %v464 = vpack.c.bf16 %v449, %v448
    %v465 = vpack.c.bf16 %v451, %v450
    %v466 = vpack.c.bf16 %v453, %v452
    %v467 = vpack.c.bf16 %v455, %v454
    %v468 = vpack.c.bf16 %v457, %v456
    %v469 = vpack.c.bf16 %v459, %v458
    %v470 = vpack.c.bf16 %v461, %v460
    %v471 = vpack.c.bf16 %v463, %v462
    %v480 = vunpack.c.l.b16 %v464
    %v481 = vunpack.c.h.b16 %v464
    %v482 = vunpack.c.l.b16 %v465
    %v483 = vunpack.c.h.b16 %v465
    %v484 = vunpack.c.l.b16 %v466
    %v485 = vunpack.c.h.b16 %v466
    %v486 = vunpack.c.l.b16 %v467
    %v487 = vunpack.c.h.b16 %v467
    %v488 = vunpack.c.l.b16 %v468
    %v489 = vunpack.c.h.b16 %v468
    %v490 = vunpack.c.l.b16 %v469
    %v491 = vunpack.c.h.b16 %v469
    %v492 = vunpack.c.l.b16 %v470
    %v493 = vunpack.c.h.b16 %v470
    %v494 = vunpack.c.l.b16 %v471
    %v495 = vunpack.c.h.b16 %v471
    %v496 = vpack.c.b16 %v480, %v480
    %v497 = vpack.c.b16 %v481, %v481
    %v498 = vpack.c.b16 %v482, %v482
    %v499 = vpack.c.b16 %v483, %v483
    %v500 = vpack.c.b16 %v484, %v484
    %v501 = vpack.c.b16 %v485, %v485
    %v502 = vpack.c.b16 %v486, %v486
    %v503 = vpack.c.b16 %v487, %v487
    %v504 = vpack.c.b16 %v488, %v488
    %v505 = vpack.c.b16 %v489, %v489
    %v506 = vpack.c.b16 %v490, %v490
    %v507 = vpack.c.b16 %v491, %v491
    %v508 = vpack.c.b16 %v492, %v492
    %v509 = vpack.c.b16 %v493, %v493
    %v510 = vpack.c.b16 %v494, %v494
    %v511 = vpack.c.b16 %v495, %v495
    %vm528 = vcmask 257024
    %529 = vst.msk [vmem:[%s3] sm:$0xf] %vm528, %v496
    %530 = vst.msk [vmem:[%s3 + $0x4] sm:$0xf] %vm528, %v497
    %531 = vst.msk [vmem:[%s3 + $0x8] sm:$0xf] %vm528, %v498
    %532 = vst.msk [vmem:[%s3 + $0xc] sm:$0xf] %vm528, %v499
    %533 = vst.msk [vmem:[%s3 + $0x10] sm:$0xf] %vm528, %v500
    %534 = vst.msk [vmem:[%s3 + $0x14] sm:$0xf] %vm528, %v501
    %535 = vst.msk [vmem:[%s3 + $0x18] sm:$0xf] %vm528, %v502
    %536 = vst.msk [vmem:[%s3 + $0x1c] sm:$0xf] %vm528, %v503
    %537 = vst.msk [vmem:[%s3 + $0x20] sm:$0xf] %vm528, %v504
    %538 = vst.msk [vmem:[%s3 + $0x24] sm:$0xf] %vm528, %v505
    %539 = vst.msk [vmem:[%s3 + $0x28] sm:$0xf] %vm528, %v506
    %540 = vst.msk [vmem:[%s3 + $0x2c] sm:$0xf] %vm528, %v507
    %541 = vst.msk [vmem:[%s3 + $0x30] sm:$0xf] %vm528, %v508
    %542 = vst.msk [vmem:[%s3 + $0x34] sm:$0xf] %vm528, %v509
    %543 = vst.msk [vmem:[%s3 + $0x38] sm:$0xf] %vm528, %v510
    %544 = vst.msk [vmem:[%s3 + $0x3c] sm:$0xf] %vm528, %v511
  $region21: #{_lambda_.5} parent=0 // pred_fallthru
    _
  // Predicated region
  $region22: #{_lambda_.5} parent=0 // pred_check
    _
  $region23: #{_lambda_.5} parent=0 // pred_check_branch
    %546 = sbr.rel (0) target = $region25
  $region24: #{_lambda_.5} parent=0 // pred_region
    _
  $region25: #{_lambda_.5} parent=0 // pred_fallthru
    _
  // Predicated region
  $region26: #{_lambda_.5} parent=0 // pred_check
    _
  $region27: #{_lambda_.5} parent=0 // pred_check_branch
    %548 = sbr.rel (0) target = $region29
  $region28: #{_lambda_.5} parent=0 // pred_region
    _
  $region29: #{_lambda_.5} parent=0 // pred_fallthru
    _

// kernel: _lambda_.6
$region0: #{_lambda_.6}
  #allocation0 [shape = 'u32[]', space=smem, size = 0x4, offset = 0x4, fixed_abs, tag = 'smem constant byte address 0x4 - core index']
  #allocation1 [shape = 'u32[144,128]{1,0:T(1,128)}', space=vmem, size = 0x12000, scoped, tag = 'internal scratch']
  #allocation2 [shape = 'f32[18,64]{1,0:T(8,128)}', space=vmem, size = 0x3000, scoped, tag = 'scratch operand']
  %s0 = inlined_call_operand.vmem [shape: bf16[18,512], index: 0, kind: input, shape index: {}]
  %s1 = inlined_call_operand.vmem [shape: bf16[512,64], index: 1, kind: input, shape index: {}]
  %s2 = inlined_call_operand.vmem [shape: f32[1,64], index: 2, kind: input, shape index: {}]
  %s3 = inlined_call_operand.vmem [shape: bf16[18,64], index: 3, kind: output, shape index: {}]
  %s4 = sld [smem:[#allocation0]]
  $region30: #{_lambda_.6} parent=0
    _
  %s6 = ssub.s32 1, %s4
  %s7 = scalar_select 0, %s6, %s4
  // Predicated region
  $region2: #{_lambda_.6} parent=0 // pred_check
    _
  $region3: #{_lambda_.6} parent=0 // pred_check_branch
    %9 = sbr.rel (0) target = $region5
  $region4: #{_lambda_.6} parent=0 // pred_region
    _
  $region5: #{_lambda_.6} parent=0 // pred_fallthru
    _
  // Predicated region
  $region6: #{_lambda_.6} parent=0 // pred_check
    _
  $region7: #{_lambda_.6} parent=0 // pred_check_branch
    %11 = sbr.rel (0) target = $region9
  $region8: #{_lambda_.6} parent=0 // pred_region
    _
  $region9: #{_lambda_.6} parent=0 // pred_fallthru
    _
  // Predicated region
  $region10: #{_lambda_.6} parent=0 // pred_check
    _
  $region11: #{_lambda_.6} parent=0 // pred_check_branch
    %13 = sbr.rel (0) target = $region13
  $region12: #{_lambda_.6} parent=0 // pred_region
    _
  $region13: #{_lambda_.6} parent=0 // pred_fallthru
    _
  %p15 = scmp.eq.s32.totalorder 0, 0
  // Predicated region
  $region14: #{_lambda_.6} parent=0 // pred_check
    %p16 = pneg %p15
  $region15: #{_lambda_.6} parent=0 // pred_check_branch
    %18 = sbr.rel (%p16) target = $region17
  $region16: #{_lambda_.6} parent=0 // pred_region
    %vm19 = vcmask 523264
    %20 = vst.msk [vmem:[#allocation2] sm:$0xff] %vm19, 0.0
    %21 = vst.msk [vmem:[#allocation2 + $0x8] sm:$0xff] %vm19, 0.0
    %vm22 = vcmask 517120
    %23 = vst.msk [vmem:[#allocation2 + $0x10] sm:$0x3] %vm22, 0.0
  $region17: #{_lambda_.6} parent=0 // pred_fallthru
    _
  %v24 = vld [vmem:[#allocation2] sm:$0xff]
  %v25 = vld [vmem:[#allocation2 + $0x8] sm:$0xff]
  %v26 = vld [vmem:[#allocation2 + $0x10] sm:$0x3]
  %v27 = vld [vmem:[%s0] sm:$0xff]
  %v28 = vld [vmem:[%s0 + $0x8] sm:$0xff]
  %v29 = vld [vmem:[%s0 + $0x10] sm:$0xff]
  %v30 = vld [vmem:[%s0 + $0x18] sm:$0xff]
  %v31 = vld [vmem:[%s0 + $0x20] sm:$0x11]
  %v32 = vld [vmem:[%s0 + $0x28] sm:$0x11]
  %v33 = vld [vmem:[%s1] sm:$0xf]
  %v34 = vld [vmem:[%s1 + $0x4] sm:$0xf]
  %v35 = vld [vmem:[%s1 + $0x8] sm:$0xf]
  %v36 = vld [vmem:[%s1 + $0xc] sm:$0xf]
  %v37 = vld [vmem:[%s1 + $0x10] sm:$0xf]
  %v38 = vld [vmem:[%s1 + $0x14] sm:$0xf]
  %v39 = vld [vmem:[%s1 + $0x18] sm:$0xf]
  %v40 = vld [vmem:[%s1 + $0x1c] sm:$0xf]
  %v41 = vld [vmem:[%s1 + $0x20] sm:$0xf]
  %v42 = vld [vmem:[%s1 + $0x24] sm:$0xf]
  %v43 = vld [vmem:[%s1 + $0x28] sm:$0xf]
  %v44 = vld [vmem:[%s1 + $0x2c] sm:$0xf]
  %v45 = vld [vmem:[%s1 + $0x30] sm:$0xf]
  %v46 = vld [vmem:[%s1 + $0x34] sm:$0xf]
  %v47 = vld [vmem:[%s1 + $0x38] sm:$0xf]
  %v48 = vld [vmem:[%s1 + $0x3c] sm:$0xf]
  %v49 = vld [vmem:[%s1 + $0x40] sm:$0xf]
  %v50 = vld [vmem:[%s1 + $0x44] sm:$0xf]
  %v51 = vld [vmem:[%s1 + $0x48] sm:$0xf]
  %v52 = vld [vmem:[%s1 + $0x4c] sm:$0xf]
  %v53 = vld [vmem:[%s1 + $0x50] sm:$0xf]
  %v54 = vld [vmem:[%s1 + $0x54] sm:$0xf]
  %v55 = vld [vmem:[%s1 + $0x58] sm:$0xf]
  %v56 = vld [vmem:[%s1 + $0x5c] sm:$0xf]
  %v57 = vld [vmem:[%s1 + $0x60] sm:$0xf]
  %v58 = vld [vmem:[%s1 + $0x64] sm:$0xf]
  %v59 = vld [vmem:[%s1 + $0x68] sm:$0xf]
  %v60 = vld [vmem:[%s1 + $0x6c] sm:$0xf]
  %v61 = vld [vmem:[%s1 + $0x70] sm:$0xf]
  %v62 = vld [vmem:[%s1 + $0x74] sm:$0xf]
  %v63 = vld [vmem:[%s1 + $0x78] sm:$0xf]
  %v64 = vld [vmem:[%s1 + $0x7c] sm:$0xf]
  %v65 = vld [vmem:[%s1 + $0x80] sm:$0xf]
  %v66 = vld [vmem:[%s1 + $0x84] sm:$0xf]
  %v67 = vld [vmem:[%s1 + $0x88] sm:$0xf]
  %v68 = vld [vmem:[%s1 + $0x8c] sm:$0xf]
  %v69 = vld [vmem:[%s1 + $0x90] sm:$0xf]
  %v70 = vld [vmem:[%s1 + $0x94] sm:$0xf]
  %v71 = vld [vmem:[%s1 + $0x98] sm:$0xf]
  %v72 = vld [vmem:[%s1 + $0x9c] sm:$0xf]
  %v73 = vld [vmem:[%s1 + $0xa0] sm:$0xf]
  %v74 = vld [vmem:[%s1 + $0xa4] sm:$0xf]
  %v75 = vld [vmem:[%s1 + $0xa8] sm:$0xf]
  %v76 = vld [vmem:[%s1 + $0xac] sm:$0xf]
  %v77 = vld [vmem:[%s1 + $0xb0] sm:$0xf]
  %v78 = vld [vmem:[%s1 + $0xb4] sm:$0xf]
  %v79 = vld [vmem:[%s1 + $0xb8] sm:$0xf]
  %v80 = vld [vmem:[%s1 + $0xbc] sm:$0xf]
  %v81 = vld [vmem:[%s1 + $0xc0] sm:$0xf]
  %v82 = vld [vmem:[%s1 + $0xc4] sm:$0xf]
  %v83 = vld [vmem:[%s1 + $0xc8] sm:$0xf]
  %v84 = vld [vmem:[%s1 + $0xcc] sm:$0xf]
  %v85 = vld [vmem:[%s1 + $0xd0] sm:$0xf]
  %v86 = vld [vmem:[%s1 + $0xd4] sm:$0xf]
  %v87 = vld [vmem:[%s1 + $0xd8] sm:$0xf]
  %v88 = vld [vmem:[%s1 + $0xdc] sm:$0xf]
  %v89 = vld [vmem:[%s1 + $0xe0] sm:$0xf]
  %v90 = vld [vmem:[%s1 + $0xe4] sm:$0xf]
  %v91 = vld [vmem:[%s1 + $0xe8] sm:$0xf]
  %v92 = vld [vmem:[%s1 + $0xec] sm:$0xf]
  %v93 = vld [vmem:[%s1 + $0xf0] sm:$0xf]
  %v94 = vld [vmem:[%s1 + $0xf4] sm:$0xf]
  %v95 = vld [vmem:[%s1 + $0xf8] sm:$0xf]
  %v96 = vld [vmem:[%s1 + $0xfc] sm:$0xf]
  %v103 = vunpack.c.l.b16 %v27
  %v104 = vunpack.c.h.b16 %v27
  %v105 = vunpack.c.l.b16 %v28
  %v106 = vunpack.c.h.b16 %v28
  %v107 = vunpack.c.l.b16 %v29
  %v108 = vunpack.c.h.b16 %v29
  %v109 = vunpack.c.l.b16 %v30
  %v110 = vunpack.c.h.b16 %v30
  %v111 = vunpack.c.l.b16 %v31
  %v112 = vunpack.c.h.b16 %v31
  %v113 = vunpack.c.l.b16 %v32
  %v114 = vunpack.c.h.b16 %v32
  %v115 = vpack.c.b16 %v107, %v103
  %v116 = vpack.c.b16 %v108, %v104
  %v117 = vpack.c.b16 %v109, %v105
  %v118 = vpack.c.b16 %v110, %v106
  %v119 = vpack.c.b16 %v111, %v111
  %v120 = vpack.c.b16 %v112, %v112
  %v121 = vpack.c.b16 %v113, %v113
  %v122 = vpack.c.b16 %v114, %v114
  %v195 = vunpack.c.l.b16 %v33
  %v196 = vunpack.c.l.b16 %v34
  %v197 = vunpack.c.l.b16 %v35
  %v198 = vunpack.c.l.b16 %v36
  %v199 = vunpack.c.l.b16 %v37
  %v200 = vunpack.c.l.b16 %v38
  %v201 = vunpack.c.l.b16 %v39
  %v202 = vunpack.c.l.b16 %v40
  %v203 = vunpack.c.l.b16 %v41
  %v204 = vunpack.c.l.b16 %v42
  %v205 = vunpack.c.l.b16 %v43
  %v206 = vunpack.c.l.b16 %v44
  %v207 = vunpack.c.l.b16 %v45
  %v208 = vunpack.c.l.b16 %v46
  %v209 = vunpack.c.l.b16 %v47
  %v210 = vunpack.c.l.b16 %v48
  %v211 = vunpack.c.l.b16 %v49
  %v212 = vunpack.c.l.b16 %v50
  %v213 = vunpack.c.l.b16 %v51
  %v214 = vunpack.c.l.b16 %v52
  %v215 = vunpack.c.l.b16 %v53
  %v216 = vunpack.c.l.b16 %v54
  %v217 = vunpack.c.l.b16 %v55
  %v218 = vunpack.c.l.b16 %v56
  %v219 = vunpack.c.l.b16 %v57
  %v220 = vunpack.c.l.b16 %v58
  %v221 = vunpack.c.l.b16 %v59
  %v222 = vunpack.c.l.b16 %v60
  %v223 = vunpack.c.l.b16 %v61
  %v224 = vunpack.c.l.b16 %v62
  %v225 = vunpack.c.l.b16 %v63
  %v226 = vunpack.c.l.b16 %v64
  %v227 = vunpack.c.l.b16 %v65
  %v228 = vunpack.c.l.b16 %v66
  %v229 = vunpack.c.l.b16 %v67
  %v230 = vunpack.c.l.b16 %v68
  %v231 = vunpack.c.l.b16 %v69
  %v232 = vunpack.c.l.b16 %v70
  %v233 = vunpack.c.l.b16 %v71
  %v234 = vunpack.c.l.b16 %v72
  %v235 = vunpack.c.l.b16 %v73
  %v236 = vunpack.c.l.b16 %v74
  %v237 = vunpack.c.l.b16 %v75
  %v238 = vunpack.c.l.b16 %v76
  %v239 = vunpack.c.l.b16 %v77
  %v240 = vunpack.c.l.b16 %v78
  %v241 = vunpack.c.l.b16 %v79
  %v242 = vunpack.c.l.b16 %v80
  %v243 = vunpack.c.l.b16 %v81
  %v244 = vunpack.c.l.b16 %v82
  %v245 = vunpack.c.l.b16 %v83
  %v246 = vunpack.c.l.b16 %v84
  %v247 = vunpack.c.l.b16 %v85
  %v248 = vunpack.c.l.b16 %v86
  %v249 = vunpack.c.l.b16 %v87
  %v250 = vunpack.c.l.b16 %v88
  %v251 = vunpack.c.l.b16 %v89
  %v252 = vunpack.c.l.b16 %v90
  %v253 = vunpack.c.l.b16 %v91
  %v254 = vunpack.c.l.b16 %v92
  %v255 = vunpack.c.l.b16 %v93
  %v256 = vunpack.c.l.b16 %v94
  %v257 = vunpack.c.l.b16 %v95
  %v258 = vunpack.c.l.b16 %v96
  %v259 = vpack.c.b16 %v196, %v195
  %v260 = vpack.c.b16 %v198, %v197
  %v261 = vpack.c.b16 %v200, %v199
  %v262 = vpack.c.b16 %v202, %v201
  %v263 = vpack.c.b16 %v204, %v203
  %v264 = vpack.c.b16 %v206, %v205
  %v265 = vpack.c.b16 %v208, %v207
  %v266 = vpack.c.b16 %v210, %v209
  %v267 = vpack.c.b16 %v212, %v211
  %v268 = vpack.c.b16 %v214, %v213
  %v269 = vpack.c.b16 %v216, %v215
  %v270 = vpack.c.b16 %v218, %v217
  %v271 = vpack.c.b16 %v220, %v219
  %v272 = vpack.c.b16 %v222, %v221
  %v273 = vpack.c.b16 %v224, %v223
  %v274 = vpack.c.b16 %v226, %v225
  %v275 = vpack.c.b16 %v228, %v227
  %v276 = vpack.c.b16 %v230, %v229
  %v277 = vpack.c.b16 %v232, %v231
  %v278 = vpack.c.b16 %v234, %v233
  %v279 = vpack.c.b16 %v236, %v235
  %v280 = vpack.c.b16 %v238, %v237
  %v281 = vpack.c.b16 %v240, %v239
  %v282 = vpack.c.b16 %v242, %v241
  %v283 = vpack.c.b16 %v244, %v243
  %v284 = vpack.c.b16 %v246, %v245
  %v285 = vpack.c.b16 %v248, %v247
  %v286 = vpack.c.b16 %v250, %v249
  %v287 = vpack.c.b16 %v252, %v251
  %v288 = vpack.c.b16 %v254, %v253
  %v289 = vpack.c.b16 %v256, %v255
  %v290 = vpack.c.b16 %v258, %v257
  %323 = vmatprep.subr.bf16.mxu0 0
  %324 = vmatpush1.bf16.msra.mxu0 %v266
  %325 = vmatprep.subr.bf16.mxu0 0
  %326 = vmatpush1.bf16.msra.mxu0 %v265
  %327 = vmatprep.subr.bf16.mxu0 0
  %328 = vmatpush1.bf16.msra.mxu0 %v264
  %329 = vmatprep.subr.bf16.mxu0 0
  %330 = vmatpush1.bf16.msra.mxu0 %v263
  %331 = vmatprep.subr.bf16.mxu0 0
  %332 = vmatpush1.bf16.msra.mxu0 %v262
  %333 = vmatprep.subr.bf16.mxu0 0
  %334 = vmatpush1.bf16.msra.mxu0 %v261
  %335 = vmatprep.subr.bf16.mxu0 0
  %336 = vmatpush1.bf16.msra.mxu0 %v260
  %337 = vmatprep.subr.bf16.mxu0 0
  %338 = vmatpush1.bf16.msra.mxu0 %v259
  %339 = vmatprep.subr.bf16.mxu0 0
  %340 = vmatpush2.bf16.msra.mxu0 %v274
  %341 = vmatprep.subr.bf16.mxu0 0
  %342 = vmatpush2.bf16.msra.mxu0 %v273
  %343 = vmatprep.subr.bf16.mxu0 0
  %344 = vmatpush2.bf16.msra.mxu0 %v272
  %345 = vmatprep.subr.bf16.mxu0 0
  %346 = vmatpush2.bf16.msra.mxu0 %v271
  %347 = vmatprep.subr.bf16.mxu0 0
  %348 = vmatpush2.bf16.msra.mxu0 %v270
  %349 = vmatprep.subr.bf16.mxu0 0
  %350 = vmatpush2.bf16.msra.mxu0 %v269
  %351 = vmatprep.subr.bf16.mxu0 0
  %352 = vmatpush2.bf16.msra.mxu0 %v268
  %353 = vmatprep.subr.bf16.mxu0 0
  %354 = vmatpush2.bf16.msra.mxu0 %v267
  %355 = vmatprep.mubr.bf16.mxu0 %v116
  %356 = vmatmul.mubr.bf16.gmra.mxu0 %v115
  %v357 = vpop.f32.mrf.mxu0
  %v358 = vadd.f32 0.0, %v357
  %v359 = vpop.f32.mrf.mxu0
  %v360 = vpop.f32.mrf.mxu0
  %v361 = vadd.f32 0.0, %v360
  %v362 = vpop.f32.mrf.mxu0
  %363 = vmatprep.mubr.bf16.mxu0 %v120
  %364 = vmatmul.mubr.bf16.gmra.mxu0 %v119
  %v365 = vpop.f32.mrf.mxu0
  %v366 = vadd.f32 0.0, %v365
  %v367 = vpop.f32.mrf.mxu0
  %v368 = vpop.f32.mrf.mxu0
  %v369 = vpop.f32.mrf.mxu0
  %370 = vdwg.mxu0
  %371 = vmatprep.subr.bf16.mxu0 0
  %372 = vmatpush1.bf16.msra.mxu0 %v282
  %373 = vmatprep.subr.bf16.mxu0 0
  %374 = vmatpush1.bf16.msra.mxu0 %v281
  %375 = vmatprep.subr.bf16.mxu0 0
  %376 = vmatpush1.bf16.msra.mxu0 %v280
  %377 = vmatprep.subr.bf16.mxu0 0
  %378 = vmatpush1.bf16.msra.mxu0 %v279
  %379 = vmatprep.subr.bf16.mxu0 0
  %380 = vmatpush1.bf16.msra.mxu0 %v278
  %381 = vmatprep.subr.bf16.mxu0 0
  %382 = vmatpush1.bf16.msra.mxu0 %v277
  %383 = vmatprep.subr.bf16.mxu0 0
  %384 = vmatpush1.bf16.msra.mxu0 %v276
  %385 = vmatprep.subr.bf16.mxu0 0
  %386 = vmatpush1.bf16.msra.mxu0 %v275
  %387 = vmatprep.subr.bf16.mxu0 0
  %388 = vmatpush2.bf16.msra.mxu0 %v290
  %389 = vmatprep.subr.bf16.mxu0 0
  %390 = vmatpush2.bf16.msra.mxu0 %v289
  %391 = vmatprep.subr.bf16.mxu0 0
  %392 = vmatpush2.bf16.msra.mxu0 %v288
  %393 = vmatprep.subr.bf16.mxu0 0
  %394 = vmatpush2.bf16.msra.mxu0 %v287
  %395 = vmatprep.subr.bf16.mxu0 0
  %396 = vmatpush2.bf16.msra.mxu0 %v286
  %397 = vmatprep.subr.bf16.mxu0 0
  %398 = vmatpush2.bf16.msra.mxu0 %v285
  %399 = vmatprep.subr.bf16.mxu0 0
  %400 = vmatpush2.bf16.msra.mxu0 %v284
  %401 = vmatprep.subr.bf16.mxu0 0
  %402 = vmatpush2.bf16.msra.mxu0 %v283
  %403 = vmatprep.mubr.bf16.mxu0 %v118
  %404 = vmatmul.mubr.bf16.gmra.mxu0 %v117
  %v405 = vpop.f32.mrf.mxu0
  %v406 = vadd.f32 %v358, %v405
  %v407 = vpop.f32.mrf.mxu0
  %v408 = vpop.f32.mrf.mxu0
  %v409 = vadd.f32 %v361, %v408
  %v410 = vpop.f32.mrf.mxu0
  %411 = vmatprep.mubr.bf16.mxu0 %v122
  %412 = vmatmul.mubr.bf16.gmra.mxu0 %v121
  %v413 = vpop.f32.mrf.mxu0
  %v414 = vadd.f32 %v366, %v413
  %v415 = vpop.f32.mrf.mxu0
  %v416 = vpop.f32.mrf.mxu0
  %v417 = vpop.f32.mrf.mxu0
  %418 = vdwg.mxu0
  %v419 = vadd.f32 %v24, %v406
  %v420 = vadd.f32 %v25, %v409
  %v421 = vadd.f32 %v26, %v414
  %vm422 = vcmask 523264
  %423 = vst.msk [vmem:[#allocation2] sm:$0xff] %vm422, %v419
  %424 = vst.msk [vmem:[#allocation2 + $0x8] sm:$0xff] %vm422, %v420
  %vm425 = vcmask 517120
  %426 = vst.msk [vmem:[#allocation2 + $0x10] sm:$0x3] %vm425, %v421
  // Predicated region
  $region18: #{_lambda_.6} parent=0 // pred_check
    %p427 = pneg %p15
  $region19: #{_lambda_.6} parent=0 // pred_check_branch
    %429 = sbr.rel (%p427) target = $region21
  $region20: #{_lambda_.6} parent=0 // pred_region
    %v430 = vld [vmem:[#allocation2] sm:$0xff]
    %v431 = vld [vmem:[#allocation2 + $0x8] sm:$0xff]
    %v432 = vld [vmem:[#allocation2 + $0x10] sm:$0x3]
    %v433 = vld [vmem:[%s2] sm:$0x1]
    %v435 = vlaneseq
    %v436 = vshrl.u32 %v435, 7
    %v437 = vsub.s32 0, %v436
    %v438 = vrot.slane %v433, %v437
    %v440 = vadd.f32 %v430, %v438
    %v441 = vadd.f32 %v431, %v438
    %v442 = vadd.f32 %v432, %v438
    %v443 = vmax.f32 %v440, 0.0
    %v444 = vmax.f32 %v441, 0.0
    %v445 = vmax.f32 %v442, 0.0
    %v446 = vpack.c.bf16 %v444, %v443
    %v447 = vpack.c.bf16 %v445, %v445
    %v450 = vunpack.c.l.b16 %v446
    %v451 = vunpack.c.h.b16 %v446
    %v452 = vunpack.c.l.b16 %v447
    %v453 = vpack.c.b16 %v450, %v450
    %v454 = vpack.c.b16 %v451, %v451
    %v455 = vpack.c.b16 %v452, %v452
    %vm459 = vcmask 519168
    %460 = vst.msk [vmem:[%s3] sm:$0xf] %vm459, %v453
    %461 = vst.msk [vmem:[%s3 + $0x4] sm:$0xf] %vm459, %v454
    %vm462 = vcmask 516096
    %463 = vst.msk [vmem:[%s3 + $0x8] sm:$0x1] %vm462, %v455
  $region21: #{_lambda_.6} parent=0 // pred_fallthru
    _
  // Predicated region
  $region22: #{_lambda_.6} parent=0 // pred_check
    _
  $region23: #{_lambda_.6} parent=0 // pred_check_branch
    %465 = sbr.rel (0) target = $region25
  $region24: #{_lambda_.6} parent=0 // pred_region
    _
  $region25: #{_lambda_.6} parent=0 // pred_fallthru
    _
  // Predicated region
  $region26: #{_lambda_.6} parent=0 // pred_check
    _
  $region27: #{_lambda_.6} parent=0 // pred_check_branch
    %467 = sbr.rel (0) target = $region29
  $region28: #{_lambda_.6} parent=0 // pred_region
    _
  $region29: #{_lambda_.6} parent=0 // pred_fallthru
    _

// kernel: _lambda_.8
$region0: #{_lambda_.8}
  #allocation0 [shape = 'u32[]', space=smem, size = 0x4, offset = 0x4, fixed_abs, tag = 'smem constant byte address 0x4 - core index']
  #allocation1 [shape = 'u32[144,128]{1,0:T(1,128)}', space=vmem, size = 0x12000, scoped, tag = 'internal scratch']
  #allocation2 [shape = 'f32[2,512]{1,0:T(2,128)}', space=vmem, size = 0x1000, scoped, tag = 'scratch operand']
  %s0 = inlined_call_operand.vmem [shape: bf16[2,64], index: 0, kind: input, shape index: {}]
  %s1 = inlined_call_operand.vmem [shape: bf16[64,512], index: 1, kind: input, shape index: {}]
  %s2 = inlined_call_operand.vmem [shape: f32[1,512], index: 2, kind: input, shape index: {}]
  %s3 = inlined_call_operand.vmem [shape: f32[2,512], index: 3, kind: output, shape index: {}]
  %s4 = sld [smem:[#allocation0]]
  $region30: #{_lambda_.8} parent=0
    _
  %s6 = ssub.s32 1, %s4
  %s7 = scalar_select 0, %s6, %s4
  // Predicated region
  $region2: #{_lambda_.8} parent=0 // pred_check
    _
  $region3: #{_lambda_.8} parent=0 // pred_check_branch
    %9 = sbr.rel (0) target = $region5
  $region4: #{_lambda_.8} parent=0 // pred_region
    _
  $region5: #{_lambda_.8} parent=0 // pred_fallthru
    _
  // Predicated region
  $region6: #{_lambda_.8} parent=0 // pred_check
    _
  $region7: #{_lambda_.8} parent=0 // pred_check_branch
    %11 = sbr.rel (0) target = $region9
  $region8: #{_lambda_.8} parent=0 // pred_region
    _
  $region9: #{_lambda_.8} parent=0 // pred_fallthru
    _
  // Predicated region
  $region10: #{_lambda_.8} parent=0 // pred_check
    _
  $region11: #{_lambda_.8} parent=0 // pred_check_branch
    %13 = sbr.rel (0) target = $region13
  $region12: #{_lambda_.8} parent=0 // pred_region
    _
  $region13: #{_lambda_.8} parent=0 // pred_fallthru
    _
  %p15 = scmp.eq.s32.totalorder 0, 0
  // Predicated region
  $region14: #{_lambda_.8} parent=0 // pred_check
    %p16 = pneg %p15
  $region15: #{_lambda_.8} parent=0 // pred_check_branch
    %18 = sbr.rel (%p16) target = $region17
  $region16: #{_lambda_.8} parent=0 // pred_region
    %19 = vst [vmem:[#allocation2] sm:$0xff] 0.0
  $region17: #{_lambda_.8} parent=0 // pred_fallthru
    _
  %v20 = vld [vmem:[#allocation2] sm:$0xff]
  %v21 = vld [vmem:[%s0] sm:$0x1]
  %v22 = vld [vmem:[%s1] sm:$0xff]
  %v23 = vld [vmem:[%s1 + $0x8] sm:$0xff]
  %v24 = vld [vmem:[%s1 + $0x10] sm:$0xff]
  %v25 = vld [vmem:[%s1 + $0x18] sm:$0xff]
  %v26 = vld [vmem:[%s1 + $0x20] sm:$0xff]
  %v27 = vld [vmem:[%s1 + $0x28] sm:$0xff]
  %v28 = vld [vmem:[%s1 + $0x30] sm:$0xff]
  %v29 = vld [vmem:[%s1 + $0x38] sm:$0xff]
  %v30 = vld [vmem:[%s1 + $0x40] sm:$0xff]
  %v31 = vld [vmem:[%s1 + $0x48] sm:$0xff]
  %v32 = vld [vmem:[%s1 + $0x50] sm:$0xff]
  %v33 = vld [vmem:[%s1 + $0x58] sm:$0xff]
  %v34 = vld [vmem:[%s1 + $0x60] sm:$0xff]
  %v35 = vld [vmem:[%s1 + $0x68] sm:$0xff]
  %v36 = vld [vmem:[%s1 + $0x70] sm:$0xff]
  %v37 = vld [vmem:[%s1 + $0x78] sm:$0xff]
  %v54 = vunpack.c.l.b16 %v22
  %v55 = vunpack.c.h.b16 %v22
  %v56 = vunpack.c.l.b16 %v23
  %v57 = vunpack.c.h.b16 %v23
  %v58 = vunpack.c.l.b16 %v24
  %v59 = vunpack.c.h.b16 %v24
  %v60 = vunpack.c.l.b16 %v25
  %v61 = vunpack.c.h.b16 %v25
  %v62 = vunpack.c.l.b16 %v26
  %v63 = vunpack.c.h.b16 %v26
  %v64 = vunpack.c.l.b16 %v27
  %v65 = vunpack.c.h.b16 %v27
  %v66 = vunpack.c.l.b16 %v28
  %v67 = vunpack.c.h.b16 %v28
  %v68 = vunpack.c.l.b16 %v29
  %v69 = vunpack.c.h.b16 %v29
  %v70 = vunpack.c.l.b16 %v30
  %v71 = vunpack.c.h.b16 %v30
  %v72 = vunpack.c.l.b16 %v31
  %v73 = vunpack.c.h.b16 %v31
  %v74 = vunpack.c.l.b16 %v32
  %v75 = vunpack.c.h.b16 %v32
  %v76 = vunpack.c.l.b16 %v33
  %v77 = vunpack.c.h.b16 %v33
  %v78 = vunpack.c.l.b16 %v34
  %v79 = vunpack.c.h.b16 %v34
  %v80 = vunpack.c.l.b16 %v35
  %v81 = vunpack.c.h.b16 %v35
  %v82 = vunpack.c.l.b16 %v36
  %v83 = vunpack.c.h.b16 %v36
  %v84 = vunpack.c.l.b16 %v37
  %v85 = vunpack.c.h.b16 %v37
  %v86 = vpack.c.b16 %v58, %v54
  %v87 = vpack.c.b16 %v59, %v55
  %v88 = vpack.c.b16 %v60, %v56
  %v89 = vpack.c.b16 %v61, %v57
  %v90 = vpack.c.b16 %v66, %v62
  %v91 = vpack.c.b16 %v67, %v63
  %v92 = vpack.c.b16 %v68, %v64
  %v93 = vpack.c.b16 %v69, %v65
  %v94 = vpack.c.b16 %v74, %v70
  %v95 = vpack.c.b16 %v75, %v71
  %v96 = vpack.c.b16 %v76, %v72
  %v97 = vpack.c.b16 %v77, %v73
  %v98 = vpack.c.b16 %v82, %v78
  %v99 = vpack.c.b16 %v83, %v79
  %v100 = vpack.c.b16 %v84, %v80
  %v101 = vpack.c.b16 %v85, %v81
  %vm118 = vcmask 523264
  %v120 = vsel %vm118, %v21, 0
  %122 = vmatprep.subr.bf16.mxu0 0
  %123 = vmatpush1.bf16.msra.mxu0 0
  %124 = vmatprep.subr.bf16.mxu0 0
  %125 = vmatpush1.bf16.msra.mxu0 0
  %126 = vmatprep.subr.bf16.mxu0 0
  %127 = vmatpush1.bf16.msra.mxu0 0
  %128 = vmatprep.subr.bf16.mxu0 0
  %129 = vmatpush1.bf16.msra.mxu0 0
  %130 = vmatprep.subr.bf16.mxu0 %v99
  %131 = vmatpush1.bf16.msra.mxu0 %v98
  %132 = vmatprep.subr.bf16.mxu0 %v95
  %133 = vmatpush1.bf16.msra.mxu0 %v94
  %134 = vmatprep.subr.bf16.mxu0 %v91
  %135 = vmatpush1.bf16.msra.mxu0 %v90
  %136 = vmatprep.subr.bf16.mxu0 %v87
  %137 = vmatpush1.bf16.msra.mxu0 %v86
  %138 = vmatprep.subr.bf16.mxu0 0
  %139 = vmatpush2.bf16.msra.mxu0 0
  %140 = vmatprep.subr.bf16.mxu0 0
  %141 = vmatpush2.bf16.msra.mxu0 0
  %142 = vmatprep.subr.bf16.mxu0 0
  %143 = vmatpush2.bf16.msra.mxu0 0
  %144 = vmatprep.subr.bf16.mxu0 0
  %145 = vmatpush2.bf16.msra.mxu0 0
  %146 = vmatprep.subr.bf16.mxu0 0
  %147 = vmatpush2.bf16.msra.mxu0 0
  %148 = vmatprep.subr.bf16.mxu0 0
  %149 = vmatpush2.bf16.msra.mxu0 0
  %150 = vmatprep.subr.bf16.mxu0 0
  %151 = vmatpush2.bf16.msra.mxu0 0
  %152 = vmatprep.subr.bf16.mxu0 0
  %153 = vmatpush2.bf16.msra.mxu0 0
  %154 = vmatprep.mubr.bf16.mxu0 0
  %155 = vmatmul.mubr.bf16.gmra.mxu0 %v120
  %v156 = vpop.f32.mrf.mxu0
  %v157 = vadd.f32 0.0, %v156
  %v158 = vpop.f32.mrf.mxu0
  %v159 = vadd.f32 0.0, %v158
  %v160 = vpop.f32.mrf.mxu0
  %v161 = vpop.f32.mrf.mxu0
  %162 = vdwg.mxu0
  %163 = vmatprep.subr.bf16.mxu0 0
  %164 = vmatpush1.bf16.msra.mxu0 0
  %165 = vmatprep.subr.bf16.mxu0 0
  %166 = vmatpush1.bf16.msra.mxu0 0
  %167 = vmatprep.subr.bf16.mxu0 0
  %168 = vmatpush1.bf16.msra.mxu0 0
  %169 = vmatprep.subr.bf16.mxu0 0
  %170 = vmatpush1.bf16.msra.mxu0 0
  %171 = vmatprep.subr.bf16.mxu0 %v101
  %172 = vmatpush1.bf16.msra.mxu0 %v100
  %173 = vmatprep.subr.bf16.mxu0 %v97
  %174 = vmatpush1.bf16.msra.mxu0 %v96
  %175 = vmatprep.subr.bf16.mxu0 %v93
  %176 = vmatpush1.bf16.msra.mxu0 %v92
  %177 = vmatprep.subr.bf16.mxu0 %v89
  %178 = vmatpush1.bf16.msra.mxu0 %v88
  %179 = vmatprep.subr.bf16.mxu0 0
  %180 = vmatpush2.bf16.msra.mxu0 0
  %181 = vmatprep.subr.bf16.mxu0 0
  %182 = vmatpush2.bf16.msra.mxu0 0
  %183 = vmatprep.subr.bf16.mxu0 0
  %184 = vmatpush2.bf16.msra.mxu0 0
  %185 = vmatprep.subr.bf16.mxu0 0
  %186 = vmatpush2.bf16.msra.mxu0 0
  %187 = vmatprep.subr.bf16.mxu0 0
  %188 = vmatpush2.bf16.msra.mxu0 0
  %189 = vmatprep.subr.bf16.mxu0 0
  %190 = vmatpush2.bf16.msra.mxu0 0
  %191 = vmatprep.subr.bf16.mxu0 0
  %192 = vmatpush2.bf16.msra.mxu0 0
  %193 = vmatprep.subr.bf16.mxu0 0
  %194 = vmatpush2.bf16.msra.mxu0 0
  %195 = vmatprep.mubr.bf16.mxu0 0
  %196 = vmatmul.mubr.bf16.gmra.mxu0 %v120
  %v197 = vpop.f32.mrf.mxu0
  %v198 = vadd.f32 0.0, %v197
  %v199 = vpop.f32.mrf.mxu0
  %v200 = vadd.f32 0.0, %v199
  %v201 = vpop.f32.mrf.mxu0
  %v202 = vpop.f32.mrf.mxu0
  %203 = vdwg.mxu0
  %v208 = vcombine.low %v157, %v159
  %v209 = vcombine.low %v198, %v200
  %v211 = vunpack.c.l.s4 1983009808
  %v212 = vunpack.c.0.s8 %v211
  %v213 = vlaneseq
  %v214 = vshrl.u32 %v213, 7
  %v215 = vsub.s32 %v212, %v214
  %v216 = vrot.slane %v208, %v215
  %v218 = vunpack.c.l.s4 1983009808
  %v219 = vunpack.c.0.s8 %v218
  %v220 = vlaneseq
  %v221 = vshrl.u32 %v220, 7
  %v222 = vsub.s32 %v219, %v221
  %v223 = vrot.slane %v209, %v222
  %v224 = vcombine.low %v216, %v223
  %v226 = vadd.f32 %v20, %v224
  %227 = vst [vmem:[#allocation2] sm:$0xff] %v226
  // Predicated region
  $region18: #{_lambda_.8} parent=0 // pred_check
    %p228 = pneg %p15
  $region19: #{_lambda_.8} parent=0 // pred_check_branch
    %230 = sbr.rel (%p228) target = $region21
  $region20: #{_lambda_.8} parent=0 // pred_region
    %v231 = vld [vmem:[#allocation2] sm:$0xff]
    %v232 = vld [vmem:[%s2] sm:$0xf]
    %v234 = vlaneseq
    %v235 = vshrl.u32 %v234, 7
    %v236 = vsub.s32 0, %v235
    %v237 = vrot.slane %v232, %v236
    %v238 = vlaneseq
    %v239 = vshrl.u32 %v238, 7
    %v240 = vsub.s32 1, %v239
    %v241 = vrot.slane %v232, %v240
    %v242 = vlaneseq
    %v243 = vshrl.u32 %v242, 7
    %v244 = vsub.s32 2, %v243
    %v245 = vrot.slane %v232, %v244
    %v246 = vlaneseq
    %v247 = vshrl.u32 %v246, 7
    %v248 = vsub.s32 3, %v247
    %v249 = vrot.slane %v232, %v248
    %v250 = vcombine.low %v237, %v241
    %v251 = vcombine.low %v245, %v249
    %v253 = vunpack.c.l.s4 1983009808
    %v254 = vunpack.c.0.s8 %v253
    %v255 = vlaneseq
    %v256 = vshrl.u32 %v255, 7
    %v257 = vsub.s32 %v254, %v256
    %v258 = vrot.slane %v250, %v257
    %v260 = vunpack.c.l.s4 1983009808
    %v261 = vunpack.c.0.s8 %v260
    %v262 = vlaneseq
    %v263 = vshrl.u32 %v262, 7
    %v264 = vsub.s32 %v261, %v263
    %v265 = vrot.slane %v251, %v264
    %v266 = vcombine.low %v258, %v265
    %v268 = vadd.f32 %v231, %v266
    %v269 = vmax.f32 %v268, 0.0
    %270 = vst [vmem:[%s3] sm:$0xff] %v269
  $region21: #{_lambda_.8} parent=0 // pred_fallthru
    _
  // Predicated region
  $region22: #{_lambda_.8} parent=0 // pred_check
    _
  $region23: #{_lambda_.8} parent=0 // pred_check_branch
    %272 = sbr.rel (0) target = $region25
  $region24: #{_lambda_.8} parent=0 // pred_region
    _
  $region25: #{_lambda_.8} parent=0 // pred_fallthru
    _
  // Predicated region
  $region26: #{_lambda_.8} parent=0 // pred_check
    _
  $region27: #{_lambda_.8} parent=0 // pred_check_branch
    %274 = sbr.rel (0) target = $region29
  $region28: #{_lambda_.8} parent=0 // pred_region
    _
  $region29: #{_lambda_.8} parent=0 // pred_fallthru
    _

// kernel: _lambda_.7
$region0: #{_lambda_.7}
  #allocation0 [shape = 'u32[]', space=smem, size = 0x4, offset = 0x4, fixed_abs, tag = 'smem constant byte address 0x4 - core index']
  #allocation1 [shape = 'u32[144,128]{1,0:T(1,128)}', space=vmem, size = 0x12000, scoped, tag = 'internal scratch']
  #allocation2 [shape = 'f32[2,64]{1,0:T(2,128)}', space=vmem, size = 0x400, scoped, tag = 'scratch operand']
  %s0 = inlined_call_operand.vmem [shape: bf16[2,576], index: 0, kind: input, shape index: {}]
  %s1 = inlined_call_operand.vmem [shape: bf16[576,64], index: 1, kind: input, shape index: {}]
  %s2 = inlined_call_operand.vmem [shape: f32[1,64], index: 2, kind: input, shape index: {}]
  %s3 = inlined_call_operand.vmem [shape: bf16[2,64], index: 3, kind: output, shape index: {}]
  %s4 = sld [smem:[#allocation0]]
  $region30: #{_lambda_.7} parent=0
    _
  %s6 = ssub.s32 1, %s4
  %s7 = scalar_select 0, %s6, %s4
  // Predicated region
  $region2: #{_lambda_.7} parent=0 // pred_check
    _
  $region3: #{_lambda_.7} parent=0 // pred_check_branch
    %9 = sbr.rel (0) target = $region5
  $region4: #{_lambda_.7} parent=0 // pred_region
    _
  $region5: #{_lambda_.7} parent=0 // pred_fallthru
    _
  // Predicated region
  $region6: #{_lambda_.7} parent=0 // pred_check
    _
  $region7: #{_lambda_.7} parent=0 // pred_check_branch
    %11 = sbr.rel (0) target = $region9
  $region8: #{_lambda_.7} parent=0 // pred_region
    _
  $region9: #{_lambda_.7} parent=0 // pred_fallthru
    _
  // Predicated region
  $region10: #{_lambda_.7} parent=0 // pred_check
    _
  $region11: #{_lambda_.7} parent=0 // pred_check_branch
    %13 = sbr.rel (0) target = $region13
  $region12: #{_lambda_.7} parent=0 // pred_region
    _
  $region13: #{_lambda_.7} parent=0 // pred_fallthru
    _
  %p15 = scmp.eq.s32.totalorder 0, 0
  // Predicated region
  $region14: #{_lambda_.7} parent=0 // pred_check
    %p16 = pneg %p15
  $region15: #{_lambda_.7} parent=0 // pred_check_branch
    %18 = sbr.rel (%p16) target = $region17
  $region16: #{_lambda_.7} parent=0 // pred_region
    %vm19 = vcmask 517120
    %20 = vst.msk [vmem:[#allocation2] sm:$0x3] %vm19, 0.0
  $region17: #{_lambda_.7} parent=0 // pred_fallthru
    _
  %v21 = vld [vmem:[#allocation2] sm:$0x3]
  %v22 = vld [vmem:[%s0] sm:$0x1f]
  %v23 = vld [vmem:[%s1] sm:$0xf]
  %v24 = vld [vmem:[%s1 + $0x4] sm:$0xf]
  %v25 = vld [vmem:[%s1 + $0x8] sm:$0xf]
  %v26 = vld [vmem:[%s1 + $0xc] sm:$0xf]
  %v27 = vld [vmem:[%s1 + $0x10] sm:$0xf]
  %v28 = vld [vmem:[%s1 + $0x14] sm:$0xf]
  %v29 = vld [vmem:[%s1 + $0x18] sm:$0xf]
  %v30 = vld [vmem:[%s1 + $0x1c] sm:$0xf]
  %v31 = vld [vmem:[%s1 + $0x20] sm:$0xf]
  %v32 = vld [vmem:[%s1 + $0x24] sm:$0xf]
  %v33 = vld [vmem:[%s1 + $0x28] sm:$0xf]
  %v34 = vld [vmem:[%s1 + $0x2c] sm:$0xf]
  %v35 = vld [vmem:[%s1 + $0x30] sm:$0xf]
  %v36 = vld [vmem:[%s1 + $0x34] sm:$0xf]
  %v37 = vld [vmem:[%s1 + $0x38] sm:$0xf]
  %v38 = vld [vmem:[%s1 + $0x3c] sm:$0xf]
  %v39 = vld [vmem:[%s1 + $0x40] sm:$0xf]
  %v40 = vld [vmem:[%s1 + $0x44] sm:$0xf]
  %v41 = vld [vmem:[%s1 + $0x48] sm:$0xf]
  %v42 = vld [vmem:[%s1 + $0x4c] sm:$0xf]
  %v43 = vld [vmem:[%s1 + $0x50] sm:$0xf]
  %v44 = vld [vmem:[%s1 + $0x54] sm:$0xf]
  %v45 = vld [vmem:[%s1 + $0x58] sm:$0xf]
  %v46 = vld [vmem:[%s1 + $0x5c] sm:$0xf]
  %v47 = vld [vmem:[%s1 + $0x60] sm:$0xf]
  %v48 = vld [vmem:[%s1 + $0x64] sm:$0xf]
  %v49 = vld [vmem:[%s1 + $0x68] sm:$0xf]
  %v50 = vld [vmem:[%s1 + $0x6c] sm:$0xf]
  %v51 = vld [vmem:[%s1 + $0x70] sm:$0xf]
  %v52 = vld [vmem:[%s1 + $0x74] sm:$0xf]
  %v53 = vld [vmem:[%s1 + $0x78] sm:$0xf]
  %v54 = vld [vmem:[%s1 + $0x7c] sm:$0xf]
  %v55 = vld [vmem:[%s1 + $0x80] sm:$0xf]
  %v56 = vld [vmem:[%s1 + $0x84] sm:$0xf]
  %v57 = vld [vmem:[%s1 + $0x88] sm:$0xf]
  %v58 = vld [vmem:[%s1 + $0x8c] sm:$0xf]
  %v59 = vld [vmem:[%s1 + $0x90] sm:$0xf]
  %v60 = vld [vmem:[%s1 + $0x94] sm:$0xf]
  %v61 = vld [vmem:[%s1 + $0x98] sm:$0xf]
  %v62 = vld [vmem:[%s1 + $0x9c] sm:$0xf]
  %v63 = vld [vmem:[%s1 + $0xa0] sm:$0xf]
  %v64 = vld [vmem:[%s1 + $0xa4] sm:$0xf]
  %v65 = vld [vmem:[%s1 + $0xa8] sm:$0xf]
  %v66 = vld [vmem:[%s1 + $0xac] sm:$0xf]
  %v67 = vld [vmem:[%s1 + $0xb0] sm:$0xf]
  %v68 = vld [vmem:[%s1 + $0xb4] sm:$0xf]
  %v69 = vld [vmem:[%s1 + $0xb8] sm:$0xf]
  %v70 = vld [vmem:[%s1 + $0xbc] sm:$0xf]
  %v71 = vld [vmem:[%s1 + $0xc0] sm:$0xf]
  %v72 = vld [vmem:[%s1 + $0xc4] sm:$0xf]
  %v73 = vld [vmem:[%s1 + $0xc8] sm:$0xf]
  %v74 = vld [vmem:[%s1 + $0xcc] sm:$0xf]
  %v75 = vld [vmem:[%s1 + $0xd0] sm:$0xf]
  %v76 = vld [vmem:[%s1 + $0xd4] sm:$0xf]
  %v77 = vld [vmem:[%s1 + $0xd8] sm:$0xf]
  %v78 = vld [vmem:[%s1 + $0xdc] sm:$0xf]
  %v79 = vld [vmem:[%s1 + $0xe0] sm:$0xf]
  %v80 = vld [vmem:[%s1 + $0xe4] sm:$0xf]
  %v81 = vld [vmem:[%s1 + $0xe8] sm:$0xf]
  %v82 = vld [vmem:[%s1 + $0xec] sm:$0xf]
  %v83 = vld [vmem:[%s1 + $0xf0] sm:$0xf]
  %v84 = vld [vmem:[%s1 + $0xf4] sm:$0xf]
  %v85 = vld [vmem:[%s1 + $0xf8] sm:$0xf]
  %v86 = vld [vmem:[%s1 + $0xfc] sm:$0xf]
  %v87 = vld [vmem:[%s1 + $0x100] sm:$0xf]
  %v88 = vld [vmem:[%s1 + $0x104] sm:$0xf]
  %v89 = vld [vmem:[%s1 + $0x108] sm:$0xf]
  %v90 = vld [vmem:[%s1 + $0x10c] sm:$0xf]
  %v91 = vld [vmem:[%s1 + $0x110] sm:$0xf]
  %v92 = vld [vmem:[%s1 + $0x114] sm:$0xf]
  %v93 = vld [vmem:[%s1 + $0x118] sm:$0xf]
  %v94 = vld [vmem:[%s1 + $0x11c] sm:$0xf]
  %v96 = vcombine.high %v22, %v22
  %v98 = vunpack.c.l.s4 1966171168
  %v99 = vunpack.c.0.s8 %v98
  %v100 = vlaneseq
  %v101 = vshrl.u32 %v100, 7
  %v102 = vsub.s32 %v99, %v101
  %v103 = vrot.slane %v22, %v102
  %v105 = vunpack.c.l.s4 1966171168
  %v106 = vunpack.c.0.s8 %v105
  %v107 = vlaneseq
  %v108 = vshrl.u32 %v107, 7
  %v109 = vsub.s32 %v106, %v108
  %v110 = vrot.slane %v96, %v109
  %v111 = vcombine.high %v103, %v103
  %v113 = vunpack.c.l.s4 1966171168
  %v114 = vunpack.c.0.s8 %v113
  %v115 = vlaneseq
  %v116 = vshrl.u32 %v115, 7
  %v117 = vsub.s32 %v114, %v116
  %v118 = vrot.slane %v103, %v117
  %v120 = vunpack.c.l.s4 1966171168
  %v121 = vunpack.c.0.s8 %v120
  %v122 = vlaneseq
  %v123 = vshrl.u32 %v122, 7
  %v124 = vsub.s32 %v121, %v123
  %v125 = vrot.slane %v110, %v124
  %v127 = vunpack.c.l.s4 1966171168
  %v128 = vunpack.c.0.s8 %v127
  %v129 = vlaneseq
  %v130 = vshrl.u32 %v129, 7
  %v131 = vsub.s32 %v128, %v130
  %v132 = vrot.slane %v111, %v131
  %v133 = vcombine.high %v118, %v118
  %v134 = vcombine.high %v132, %v132
  %v211 = vunpack.c.l.b16 %v23
  %v212 = vunpack.c.l.b16 %v24
  %v213 = vunpack.c.l.b16 %v25
  %v214 = vunpack.c.l.b16 %v26
  %v215 = vunpack.c.l.b16 %v27
  %v216 = vunpack.c.l.b16 %v28
  %v217 = vunpack.c.l.b16 %v29
  %v218 = vunpack.c.l.b16 %v30
  %v219 = vunpack.c.l.b16 %v31
  %v220 = vunpack.c.l.b16 %v32
  %v221 = vunpack.c.l.b16 %v33
  %v222 = vunpack.c.l.b16 %v34
  %v223 = vunpack.c.l.b16 %v35
  %v224 = vunpack.c.l.b16 %v36
  %v225 = vunpack.c.l.b16 %v37
  %v226 = vunpack.c.l.b16 %v38
  %v227 = vunpack.c.l.b16 %v39
  %v228 = vunpack.c.l.b16 %v40
  %v229 = vunpack.c.l.b16 %v41
  %v230 = vunpack.c.l.b16 %v42
  %v231 = vunpack.c.l.b16 %v43
  %v232 = vunpack.c.l.b16 %v44
  %v233 = vunpack.c.l.b16 %v45
  %v234 = vunpack.c.l.b16 %v46
  %v235 = vunpack.c.l.b16 %v47
  %v236 = vunpack.c.l.b16 %v48
  %v237 = vunpack.c.l.b16 %v49
  %v238 = vunpack.c.l.b16 %v50
  %v239 = vunpack.c.l.b16 %v51
  %v240 = vunpack.c.l.b16 %v52
  %v241 = vunpack.c.l.b16 %v53
  %v242 = vunpack.c.l.b16 %v54
  %v243 = vunpack.c.l.b16 %v55
  %v244 = vunpack.c.l.b16 %v56
  %v245 = vunpack.c.l.b16 %v57
  %v246 = vunpack.c.l.b16 %v58
  %v247 = vunpack.c.l.b16 %v59
  %v248 = vunpack.c.l.b16 %v60
  %v249 = vunpack.c.l.b16 %v61
  %v250 = vunpack.c.l.b16 %v62
  %v251 = vunpack.c.l.b16 %v63
  %v252 = vunpack.c.l.b16 %v64
  %v253 = vunpack.c.l.b16 %v65
  %v254 = vunpack.c.l.b16 %v66
  %v255 = vunpack.c.l.b16 %v67
  %v256 = vunpack.c.l.b16 %v68
  %v257 = vunpack.c.l.b16 %v69
  %v258 = vunpack.c.l.b16 %v70
  %v259 = vunpack.c.l.b16 %v71
  %v260 = vunpack.c.l.b16 %v72
  %v261 = vunpack.c.l.b16 %v73
  %v262 = vunpack.c.l.b16 %v74
  %v263 = vunpack.c.l.b16 %v75
  %v264 = vunpack.c.l.b16 %v76
  %v265 = vunpack.c.l.b16 %v77
  %v266 = vunpack.c.l.b16 %v78
  %v267 = vunpack.c.l.b16 %v79
  %v268 = vunpack.c.l.b16 %v80
  %v269 = vunpack.c.l.b16 %v81
  %v270 = vunpack.c.l.b16 %v82
  %v271 = vunpack.c.l.b16 %v83
  %v272 = vunpack.c.l.b16 %v84
  %v273 = vunpack.c.l.b16 %v85
  %v274 = vunpack.c.l.b16 %v86
  %v275 = vunpack.c.l.b16 %v87
  %v276 = vunpack.c.l.b16 %v88
  %v277 = vunpack.c.l.b16 %v89
  %v278 = vunpack.c.l.b16 %v90
  %v279 = vunpack.c.l.b16 %v91
  %v280 = vunpack.c.l.b16 %v92
  %v281 = vunpack.c.l.b16 %v93
  %v282 = vunpack.c.l.b16 %v94
  %v283 = vpack.c.b16 %v212, %v211
  %v284 = vpack.c.b16 %v214, %v213
  %v285 = vpack.c.b16 %v216, %v215
  %v286 = vpack.c.b16 %v218, %v217
  %v287 = vpack.c.b16 %v220, %v219
  %v288 = vpack.c.b16 %v222, %v221
  %v289 = vpack.c.b16 %v224, %v223
  %v290 = vpack.c.b16 %v226, %v225
  %v291 = vpack.c.b16 %v228, %v227
  %v292 = vpack.c.b16 %v230, %v229
  %v293 = vpack.c.b16 %v232, %v231
  %v294 = vpack.c.b16 %v234, %v233
  %v295 = vpack.c.b16 %v236, %v235
  %v296 = vpack.c.b16 %v238, %v237
  %v297 = vpack.c.b16 %v240, %v239
  %v298 = vpack.c.b16 %v242, %v241
  %v299 = vpack.c.b16 %v244, %v243
  %v300 = vpack.c.b16 %v246, %v245
  %v301 = vpack.c.b16 %v248, %v247
  %v302 = vpack.c.b16 %v250, %v249
  %v303 = vpack.c.b16 %v252, %v251
  %v304 = vpack.c.b16 %v254, %v253
  %v305 = vpack.c.b16 %v256, %v255
  %v306 = vpack.c.b16 %v258, %v257
  %v307 = vpack.c.b16 %v260, %v259
  %v308 = vpack.c.b16 %v262, %v261
  %v309 = vpack.c.b16 %v264, %v263
  %v310 = vpack.c.b16 %v266, %v265
  %v311 = vpack.c.b16 %v268, %v267
  %v312 = vpack.c.b16 %v270, %v269
  %v313 = vpack.c.b16 %v272, %v271
  %v314 = vpack.c.b16 %v274, %v273
  %v315 = vpack.c.b16 %v276, %v275
  %v316 = vpack.c.b16 %v278, %v277
  %v317 = vpack.c.b16 %v280, %v279
  %v318 = vpack.c.b16 %v282, %v281
  %vm355 = vcmask 523264
  %v357 = vsel %vm355, %v125, 0
  %359 = vmatprep.subr.bf16.mxu0 0
  %360 = vmatpush1.bf16.msra.mxu0 %v290
  %361 = vmatprep.subr.bf16.mxu0 0
  %362 = vmatpush1.bf16.msra.mxu0 %v289
  %363 = vmatprep.subr.bf16.mxu0 0
  %364 = vmatpush1.bf16.msra.mxu0 %v288
  %365 = vmatprep.subr.bf16.mxu0 0
  %366 = vmatpush1.bf16.msra.mxu0 %v287
  %367 = vmatprep.subr.bf16.mxu0 0
  %368 = vmatpush1.bf16.msra.mxu0 %v286
  %369 = vmatprep.subr.bf16.mxu0 0
  %370 = vmatpush1.bf16.msra.mxu0 %v285
  %371 = vmatprep.subr.bf16.mxu0 0
  %372 = vmatpush1.bf16.msra.mxu0 %v284
  %373 = vmatprep.subr.bf16.mxu0 0
  %374 = vmatpush1.bf16.msra.mxu0 %v283
  %375 = vmatprep.subr.bf16.mxu0 0
  %376 = vmatpush2.bf16.msra.mxu0 %v298
  %377 = vmatprep.subr.bf16.mxu0 0
  %378 = vmatpush2.bf16.msra.mxu0 %v297
  %379 = vmatprep.subr.bf16.mxu0 0
  %380 = vmatpush2.bf16.msra.mxu0 %v296
  %381 = vmatprep.subr.bf16.mxu0 0
  %382 = vmatpush2.bf16.msra.mxu0 %v295
  %383 = vmatprep.subr.bf16.mxu0 0
  %384 = vmatpush2.bf16.msra.mxu0 %v294
  %385 = vmatprep.subr.bf16.mxu0 0
  %386 = vmatpush2.bf16.msra.mxu0 %v293
  %387 = vmatprep.subr.bf16.mxu0 0
  %388 = vmatpush2.bf16.msra.mxu0 %v292
  %389 = vmatprep.subr.bf16.mxu0 0
  %390 = vmatpush2.bf16.msra.mxu0 %v291
  %391 = vmatprep.mubr.bf16.mxu0 %v132
  %392 = vmatmul.mubr.bf16.gmra.mxu0 %v118
  %v393 = vpop.f32.mrf.mxu0
  %v394 = vadd.f32 0.0, %v393
  %v395 = vpop.f32.mrf.mxu0
  %v396 = vpop.f32.mrf.mxu0
  %v397 = vpop.f32.mrf.mxu0
  %398 = vdwg.mxu0
  %399 = vmatprep.subr.bf16.mxu0 0
  %400 = vmatpush1.bf16.msra.mxu0 %v306
  %401 = vmatprep.subr.bf16.mxu0 0
  %402 = vmatpush1.bf16.msra.mxu0 %v305
  %403 = vmatprep.subr.bf16.mxu0 0
  %404 = vmatpush1.bf16.msra.mxu0 %v304
  %405 = vmatprep.subr.bf16.mxu0 0
  %406 = vmatpush1.bf16.msra.mxu0 %v303
  %407 = vmatprep.subr.bf16.mxu0 0
  %408 = vmatpush1.bf16.msra.mxu0 %v302
  %409 = vmatprep.subr.bf16.mxu0 0
  %410 = vmatpush1.bf16.msra.mxu0 %v301
  %411 = vmatprep.subr.bf16.mxu0 0
  %412 = vmatpush1.bf16.msra.mxu0 %v300
  %413 = vmatprep.subr.bf16.mxu0 0
  %414 = vmatpush1.bf16.msra.mxu0 %v299
  %415 = vmatprep.subr.bf16.mxu0 0
  %416 = vmatpush2.bf16.msra.mxu0 %v314
  %417 = vmatprep.subr.bf16.mxu0 0
  %418 = vmatpush2.bf16.msra.mxu0 %v313
  %419 = vmatprep.subr.bf16.mxu0 0
  %420 = vmatpush2.bf16.msra.mxu0 %v312
  %421 = vmatprep.subr.bf16.mxu0 0
  %422 = vmatpush2.bf16.msra.mxu0 %v311
  %423 = vmatprep.subr.bf16.mxu0 0
  %424 = vmatpush2.bf16.msra.mxu0 %v310
  %425 = vmatprep.subr.bf16.mxu0 0
  %426 = vmatpush2.bf16.msra.mxu0 %v309
  %427 = vmatprep.subr.bf16.mxu0 0
  %428 = vmatpush2.bf16.msra.mxu0 %v308
  %429 = vmatprep.subr.bf16.mxu0 0
  %430 = vmatpush2.bf16.msra.mxu0 %v307
  %431 = vmatprep.mubr.bf16.mxu0 %v134
  %432 = vmatmul.mubr.bf16.gmra.mxu0 %v133
  %v433 = vpop.f32.mrf.mxu0
  %v434 = vadd.f32 %v394, %v433
  %v435 = vpop.f32.mrf.mxu0
  %v436 = vpop.f32.mrf.mxu0
  %v437 = vpop.f32.mrf.mxu0
  %438 = vdwg.mxu0
  %439 = vmatprep.subr.bf16.mxu0 0
  %440 = vmatpush1.bf16.msra.mxu0 0
  %441 = vmatprep.subr.bf16.mxu0 0
  %442 = vmatpush1.bf16.msra.mxu0 0
  %443 = vmatprep.subr.bf16.mxu0 0
  %444 = vmatpush1.bf16.msra.mxu0 0
  %445 = vmatprep.subr.bf16.mxu0 0
  %446 = vmatpush1.bf16.msra.mxu0 0
  %447 = vmatprep.subr.bf16.mxu0 0
  %448 = vmatpush1.bf16.msra.mxu0 %v318
  %449 = vmatprep.subr.bf16.mxu0 0
  %450 = vmatpush1.bf16.msra.mxu0 %v317
  %451 = vmatprep.subr.bf16.mxu0 0
  %452 = vmatpush1.bf16.msra.mxu0 %v316
  %453 = vmatprep.subr.bf16.mxu0 0
  %454 = vmatpush1.bf16.msra.mxu0 %v315
  %455 = vmatprep.subr.bf16.mxu0 0
  %456 = vmatpush2.bf16.msra.mxu0 0
  %457 = vmatprep.subr.bf16.mxu0 0
  %458 = vmatpush2.bf16.msra.mxu0 0
  %459 = vmatprep.subr.bf16.mxu0 0
  %460 = vmatpush2.bf16.msra.mxu0 0
  %461 = vmatprep.subr.bf16.mxu0 0
  %462 = vmatpush2.bf16.msra.mxu0 0
  %463 = vmatprep.subr.bf16.mxu0 0
  %464 = vmatpush2.bf16.msra.mxu0 0
  %465 = vmatprep.subr.bf16.mxu0 0
  %466 = vmatpush2.bf16.msra.mxu0 0
  %467 = vmatprep.subr.bf16.mxu0 0
  %468 = vmatpush2.bf16.msra.mxu0 0
  %469 = vmatprep.subr.bf16.mxu0 0
  %470 = vmatpush2.bf16.msra.mxu0 0
  %471 = vmatprep.mubr.bf16.mxu0 0
  %472 = vmatmul.mubr.bf16.gmra.mxu0 %v357
  %v473 = vpop.f32.mrf.mxu0
  %v474 = vadd.f32 %v434, %v473
  %v475 = vpop.f32.mrf.mxu0
  %v476 = vpop.f32.mrf.mxu0
  %v477 = vpop.f32.mrf.mxu0
  %478 = vdwg.mxu0
  %v479 = vadd.f32 %v21, %v474
  %vm480 = vcmask 517120
  %481 = vst.msk [vmem:[#allocation2] sm:$0x3] %vm480, %v479
  // Predicated region
  $region18: #{_lambda_.7} parent=0 // pred_check
    %p482 = pneg %p15
  $region19: #{_lambda_.7} parent=0 // pred_check_branch
    %484 = sbr.rel (%p482) target = $region21
  $region20: #{_lambda_.7} parent=0 // pred_region
    %v485 = vld [vmem:[#allocation2] sm:$0x3]
    %v486 = vld [vmem:[%s2] sm:$0x1]
    %v488 = vlaneseq
    %v489 = vshrl.u32 %v488, 7
    %v490 = vsub.s32 0, %v489
    %v491 = vrot.slane %v486, %v490
    %v493 = vadd.f32 %v485, %v491
    %v494 = vmax.f32 %v493, 0.0
    %v495 = vpack.c.bf16 %v494, %v494
    %vm496 = vcmask 516096
    %497 = vst.msk [vmem:[%s3] sm:$0x1] %vm496, %v495
  $region21: #{_lambda_.7} parent=0 // pred_fallthru
    _
  // Predicated region
  $region22: #{_lambda_.7} parent=0 // pred_check
    _
  $region23: #{_lambda_.7} parent=0 // pred_check_branch
    %499 = sbr.rel (0) target = $region25
  $region24: #{_lambda_.7} parent=0 // pred_region
    _
  $region25: #{_lambda_.7} parent=0 // pred_fallthru
    _
  // Predicated region
  $region26: #{_lambda_.7} parent=0 // pred_check
    _
  $region27: #{_lambda_.7} parent=0 // pred_check_branch
    %501 = sbr.rel (0) target = $region29
  $region28: #{_lambda_.7} parent=0 // pred_region
    _
  $region29: #{_lambda_.7} parent=0 // pred_fallthru
    _

// kernel: _lambda_.9
$region0: #{_lambda_.9}
  #allocation0 [shape = 'u32[]', space=smem, size = 0x4, offset = 0x4, fixed_abs, tag = 'smem constant byte address 0x4 - core index']
  #allocation1 [shape = 'u32[144,128]{1,0:T(1,128)}', space=vmem, size = 0x12000, scoped, tag = 'internal scratch']
  #allocation2 [shape = 'f32[2,128]{1,0:T(2,128)}', space=vmem, size = 0x400, scoped, tag = 'scratch operand']
  %s0 = inlined_call_operand.vmem [shape: f32[2,512], index: 0, kind: input, shape index: {}]
  %s1 = inlined_call_operand.vmem [shape: f32[512,128], index: 1, kind: input, shape index: {}]
  %s2 = inlined_call_operand.vmem [shape: f32[1,128], index: 2, kind: input, shape index: {}]
  %s3 = inlined_call_operand.hbm [shape: f32[2,128], index: 3, kind: output, shape index: {}]
  %s4 = sld [smem:[#allocation0]]
  $region30: #{_lambda_.9} parent=0
    _
  %s6 = ssub.s32 1, %s4
  %s7 = scalar_select 0, %s6, %s4
  $region1: #{_lambda_.9} parent=0
    #allocation3 [shape = 'u8[1024]{0}', space=vmem, size = 0x400, scoped, tag = 'output window, operand 0, single buffered']
    #allocation4 [shape = 's32[1]{0}', space=sflag, size = 0x4, scoped, tag = 'scoped memory for _lambda_.9']
    %8 = vsyncpa [#allocation4], 0
    // Predicated region
    $region2: #{_lambda_.9} parent=1 // pred_check
      _
    $region3: #{_lambda_.9} parent=1 // pred_check_branch
      %10 = sbr.rel (0) target = $region5
    $region4: #{_lambda_.9} parent=1 // pred_region
      _
    $region5: #{_lambda_.9} parent=1 // pred_fallthru
      _
    // Predicated region
    $region6: #{_lambda_.9} parent=1 // pred_check
      _
    $region7: #{_lambda_.9} parent=1 // pred_check_branch
      %12 = sbr.rel (0) target = $region9
    $region8: #{_lambda_.9} parent=1 // pred_region
      _
    $region9: #{_lambda_.9} parent=1 // pred_fallthru
      _
    // Predicated region
    $region10: #{_lambda_.9} parent=1 // pred_check
      _
    $region11: #{_lambda_.9} parent=1 // pred_check_branch
      %14 = sbr.rel (0) target = $region13
    $region12: #{_lambda_.9} parent=1 // pred_region
      _
    $region13: #{_lambda_.9} parent=1 // pred_fallthru
      _
    %p15 = scmp.eq.s32.totalorder 0, 0
    // Predicated region
    $region14: #{_lambda_.9} parent=1 // pred_check
      %p16 = pneg %p15
    $region15: #{_lambda_.9} parent=1 // pred_check_branch
      %18 = sbr.rel (%p16) target = $region17
    $region16: #{_lambda_.9} parent=1 // pred_region
      %19 = vst [vmem:[#allocation2] sm:$0x3] 0.0
    $region17: #{_lambda_.9} parent=1 // pred_fallthru
      _
    %v20 = vld [vmem:[#allocation2] sm:$0x3]
    %v21 = vld [vmem:[%s0] sm:$0xff]
    %v22 = vld [vmem:[%s1] sm:$0xff]
    %v23 = vld [vmem:[%s1 + $0x8] sm:$0xff]
    %v24 = vld [vmem:[%s1 + $0x10] sm:$0xff]
    %v25 = vld [vmem:[%s1 + $0x18] sm:$0xff]
    %v26 = vld [vmem:[%s1 + $0x20] sm:$0xff]
    %v27 = vld [vmem:[%s1 + $0x28] sm:$0xff]
    %v28 = vld [vmem:[%s1 + $0x30] sm:$0xff]
    %v29 = vld [vmem:[%s1 + $0x38] sm:$0xff]
    %v30 = vld [vmem:[%s1 + $0x40] sm:$0xff]
    %v31 = vld [vmem:[%s1 + $0x48] sm:$0xff]
    %v32 = vld [vmem:[%s1 + $0x50] sm:$0xff]
    %v33 = vld [vmem:[%s1 + $0x58] sm:$0xff]
    %v34 = vld [vmem:[%s1 + $0x60] sm:$0xff]
    %v35 = vld [vmem:[%s1 + $0x68] sm:$0xff]
    %v36 = vld [vmem:[%s1 + $0x70] sm:$0xff]
    %v37 = vld [vmem:[%s1 + $0x78] sm:$0xff]
    %v38 = vld [vmem:[%s1 + $0x80] sm:$0xff]
    %v39 = vld [vmem:[%s1 + $0x88] sm:$0xff]
    %v40 = vld [vmem:[%s1 + $0x90] sm:$0xff]
    %v41 = vld [vmem:[%s1 + $0x98] sm:$0xff]
    %v42 = vld [vmem:[%s1 + $0xa0] sm:$0xff]
    %v43 = vld [vmem:[%s1 + $0xa8] sm:$0xff]
    %v44 = vld [vmem:[%s1 + $0xb0] sm:$0xff]
    %v45 = vld [vmem:[%s1 + $0xb8] sm:$0xff]
    %v46 = vld [vmem:[%s1 + $0xc0] sm:$0xff]
    %v47 = vld [vmem:[%s1 + $0xc8] sm:$0xff]
    %v48 = vld [vmem:[%s1 + $0xd0] sm:$0xff]
    %v49 = vld [vmem:[%s1 + $0xd8] sm:$0xff]
    %v50 = vld [vmem:[%s1 + $0xe0] sm:$0xff]
    %v51 = vld [vmem:[%s1 + $0xe8] sm:$0xff]
    %v52 = vld [vmem:[%s1 + $0xf0] sm:$0xff]
    %v53 = vld [vmem:[%s1 + $0xf8] sm:$0xff]
    %v54 = vld [vmem:[%s1 + $0x100] sm:$0xff]
    %v55 = vld [vmem:[%s1 + $0x108] sm:$0xff]
    %v56 = vld [vmem:[%s1 + $0x110] sm:$0xff]
    %v57 = vld [vmem:[%s1 + $0x118] sm:$0xff]
    %v58 = vld [vmem:[%s1 + $0x120] sm:$0xff]
    %v59 = vld [vmem:[%s1 + $0x128] sm:$0xff]
    %v60 = vld [vmem:[%s1 + $0x130] sm:$0xff]
    %v61 = vld [vmem:[%s1 + $0x138] sm:$0xff]
    %v62 = vld [vmem:[%s1 + $0x140] sm:$0xff]
    %v63 = vld [vmem:[%s1 + $0x148] sm:$0xff]
    %v64 = vld [vmem:[%s1 + $0x150] sm:$0xff]
    %v65 = vld [vmem:[%s1 + $0x158] sm:$0xff]
    %v66 = vld [vmem:[%s1 + $0x160] sm:$0xff]
    %v67 = vld [vmem:[%s1 + $0x168] sm:$0xff]
    %v68 = vld [vmem:[%s1 + $0x170] sm:$0xff]
    %v69 = vld [vmem:[%s1 + $0x178] sm:$0xff]
    %v70 = vld [vmem:[%s1 + $0x180] sm:$0xff]
    %v71 = vld [vmem:[%s1 + $0x188] sm:$0xff]
    %v72 = vld [vmem:[%s1 + $0x190] sm:$0xff]
    %v73 = vld [vmem:[%s1 + $0x198] sm:$0xff]
    %v74 = vld [vmem:[%s1 + $0x1a0] sm:$0xff]
    %v75 = vld [vmem:[%s1 + $0x1a8] sm:$0xff]
    %v76 = vld [vmem:[%s1 + $0x1b0] sm:$0xff]
    %v77 = vld [vmem:[%s1 + $0x1b8] sm:$0xff]
    %v78 = vld [vmem:[%s1 + $0x1c0] sm:$0xff]
    %v79 = vld [vmem:[%s1 + $0x1c8] sm:$0xff]
    %v80 = vld [vmem:[%s1 + $0x1d0] sm:$0xff]
    %v81 = vld [vmem:[%s1 + $0x1d8] sm:$0xff]
    %v82 = vld [vmem:[%s1 + $0x1e0] sm:$0xff]
    %v83 = vld [vmem:[%s1 + $0x1e8] sm:$0xff]
    %v84 = vld [vmem:[%s1 + $0x1f0] sm:$0xff]
    %v85 = vld [vmem:[%s1 + $0x1f8] sm:$0xff]
    %v87 = vcombine.high %v21, %v21
    %v89 = vunpack.c.l.s4 1983009808
    %v90 = vunpack.c.0.s8 %v89
    %v91 = vlaneseq
    %v92 = vshrl.u32 %v91, 7
    %v93 = vsub.s32 %v90, %v92
    %v94 = vrot.slane %v21, %v93
    %v96 = vunpack.c.l.s4 1983009808
    %v97 = vunpack.c.0.s8 %v96
    %v98 = vlaneseq
    %v99 = vshrl.u32 %v98, 7
    %v100 = vsub.s32 %v97, %v99
    %v101 = vrot.slane %v87, %v100
    %v102 = vcombine.high %v94, %v94
    %v103 = vcombine.high %v101, %v101
    %108 = vmatprep.subr.mxu0 0.0
    %109 = vmatpush1.msra.mxu0 %v37
    %110 = vmatprep.subr.mxu0 0.0
    %111 = vmatpush1.msra.mxu0 %v36
    %112 = vmatprep.subr.mxu0 0.0
    %113 = vmatpush1.msra.mxu0 %v35
    %114 = vmatprep.subr.mxu0 0.0
    %115 = vmatpush1.msra.mxu0 %v34
    %116 = vmatprep.subr.mxu0 0.0
    %117 = vmatpush1.msra.mxu0 %v33
    %118 = vmatprep.subr.mxu0 0.0
    %119 = vmatpush1.msra.mxu0 %v32
    %120 = vmatprep.subr.mxu0 0.0
    %121 = vmatpush1.msra.mxu0 %v31
    %122 = vmatprep.subr.mxu0 0.0
    %123 = vmatpush1.msra.mxu0 %v30
    %124 = vmatprep.subr.mxu0 0.0
    %125 = vmatpush1.msra.mxu0 %v29
    %126 = vmatprep.subr.mxu0 0.0
    %127 = vmatpush1.msra.mxu0 %v28
    %128 = vmatprep.subr.mxu0 0.0
    %129 = vmatpush1.msra.mxu0 %v27
    %130 = vmatprep.subr.mxu0 0.0
    %131 = vmatpush1.msra.mxu0 %v26
    %132 = vmatprep.subr.mxu0 0.0
    %133 = vmatpush1.msra.mxu0 %v25
    %134 = vmatprep.subr.mxu0 0.0
    %135 = vmatpush1.msra.mxu0 %v24
    %136 = vmatprep.subr.mxu0 0.0
    %137 = vmatpush1.msra.mxu0 %v23
    %138 = vmatprep.subr.mxu0 0.0
    %139 = vmatpush1.msra.mxu0 %v22
    %140 = vmatprep.subr.mxu0 0.0
    %141 = vmatpush2.msra.mxu0 %v53
    %142 = vmatprep.subr.mxu0 0.0
    %143 = vmatpush2.msra.mxu0 %v52
    %144 = vmatprep.subr.mxu0 0.0
    %145 = vmatpush2.msra.mxu0 %v51
    %146 = vmatprep.subr.mxu0 0.0
    %147 = vmatpush2.msra.mxu0 %v50
    %148 = vmatprep.subr.mxu0 0.0
    %149 = vmatpush2.msra.mxu0 %v49
    %150 = vmatprep.subr.mxu0 0.0
    %151 = vmatpush2.msra.mxu0 %v48
    %152 = vmatprep.subr.mxu0 0.0
    %153 = vmatpush2.msra.mxu0 %v47
    %154 = vmatprep.subr.mxu0 0.0
    %155 = vmatpush2.msra.mxu0 %v46
    %156 = vmatprep.subr.mxu0 0.0
    %157 = vmatpush2.msra.mxu0 %v45
    %158 = vmatprep.subr.mxu0 0.0
    %159 = vmatpush2.msra.mxu0 %v44
    %160 = vmatprep.subr.mxu0 0.0
    %161 = vmatpush2.msra.mxu0 %v43
    %162 = vmatprep.subr.mxu0 0.0
    %163 = vmatpush2.msra.mxu0 %v42
    %164 = vmatprep.subr.mxu0 0.0
    %165 = vmatpush2.msra.mxu0 %v41
    %166 = vmatprep.subr.mxu0 0.0
    %167 = vmatpush2.msra.mxu0 %v40
    %168 = vmatprep.subr.mxu0 0.0
    %169 = vmatpush2.msra.mxu0 %v39
    %170 = vmatprep.subr.mxu0 0.0
    %171 = vmatpush2.msra.mxu0 %v38
    %172 = vmatprep.mubr.f32.mxu0 %v102
    %173 = vmatmul.mubr.f32.gmra.mxu0 %v94
    %v174 = vpop.f32.mrf.mxu0
    %v175 = vadd.f32 0.0, %v174
    %v176 = vpop.f32.mrf.mxu0
    %177 = vdwg.mxu0
    %178 = vmatprep.subr.mxu0 0.0
    %179 = vmatpush1.msra.mxu0 %v69
    %180 = vmatprep.subr.mxu0 0.0
    %181 = vmatpush1.msra.mxu0 %v68
    %182 = vmatprep.subr.mxu0 0.0
    %183 = vmatpush1.msra.mxu0 %v67
    %184 = vmatprep.subr.mxu0 0.0
    %185 = vmatpush1.msra.mxu0 %v66
    %186 = vmatprep.subr.mxu0 0.0
    %187 = vmatpush1.msra.mxu0 %v65
    %188 = vmatprep.subr.mxu0 0.0
    %189 = vmatpush1.msra.mxu0 %v64
    %190 = vmatprep.subr.mxu0 0.0
    %191 = vmatpush1.msra.mxu0 %v63
    %192 = vmatprep.subr.mxu0 0.0
    %193 = vmatpush1.msra.mxu0 %v62
    %194 = vmatprep.subr.mxu0 0.0
    %195 = vmatpush1.msra.mxu0 %v61
    %196 = vmatprep.subr.mxu0 0.0
    %197 = vmatpush1.msra.mxu0 %v60
    %198 = vmatprep.subr.mxu0 0.0
    %199 = vmatpush1.msra.mxu0 %v59
    %200 = vmatprep.subr.mxu0 0.0
    %201 = vmatpush1.msra.mxu0 %v58
    %202 = vmatprep.subr.mxu0 0.0
    %203 = vmatpush1.msra.mxu0 %v57
    %204 = vmatprep.subr.mxu0 0.0
    %205 = vmatpush1.msra.mxu0 %v56
    %206 = vmatprep.subr.mxu0 0.0
    %207 = vmatpush1.msra.mxu0 %v55
    %208 = vmatprep.subr.mxu0 0.0
    %209 = vmatpush1.msra.mxu0 %v54
    %210 = vmatprep.subr.mxu0 0.0
    %211 = vmatpush2.msra.mxu0 %v85
    %212 = vmatprep.subr.mxu0 0.0
    %213 = vmatpush2.msra.mxu0 %v84
    %214 = vmatprep.subr.mxu0 0.0
    %215 = vmatpush2.msra.mxu0 %v83
    %216 = vmatprep.subr.mxu0 0.0
    %217 = vmatpush2.msra.mxu0 %v82
    %218 = vmatprep.subr.mxu0 0.0
    %219 = vmatpush2.msra.mxu0 %v81
    %220 = vmatprep.subr.mxu0 0.0
    %221 = vmatpush2.msra.mxu0 %v80
    %222 = vmatprep.subr.mxu0 0.0
    %223 = vmatpush2.msra.mxu0 %v79
    %224 = vmatprep.subr.mxu0 0.0
    %225 = vmatpush2.msra.mxu0 %v78
    %226 = vmatprep.subr.mxu0 0.0
    %227 = vmatpush2.msra.mxu0 %v77
    %228 = vmatprep.subr.mxu0 0.0
    %229 = vmatpush2.msra.mxu0 %v76
    %230 = vmatprep.subr.mxu0 0.0
    %231 = vmatpush2.msra.mxu0 %v75
    %232 = vmatprep.subr.mxu0 0.0
    %233 = vmatpush2.msra.mxu0 %v74
    %234 = vmatprep.subr.mxu0 0.0
    %235 = vmatpush2.msra.mxu0 %v73
    %236 = vmatprep.subr.mxu0 0.0
    %237 = vmatpush2.msra.mxu0 %v72
    %238 = vmatprep.subr.mxu0 0.0
    %239 = vmatpush2.msra.mxu0 %v71
    %240 = vmatprep.subr.mxu0 0.0
    %241 = vmatpush2.msra.mxu0 %v70
    %242 = vmatprep.mubr.f32.mxu0 %v103
    %243 = vmatmul.mubr.f32.gmra.mxu0 %v101
    %v244 = vpop.f32.mrf.mxu0
    %v245 = vadd.f32 %v175, %v244
    %v246 = vpop.f32.mrf.mxu0
    %247 = vdwg.mxu0
    %v248 = vadd.f32 %v20, %v245
    %249 = vst [vmem:[#allocation2] sm:$0x3] %v248
    // Predicated region
    $region18: #{_lambda_.9} parent=1 // pred_check
      %p250 = pneg %p15
    $region19: #{_lambda_.9} parent=1 // pred_check_branch
      %252 = sbr.rel (%p250) target = $region21
    $region20: #{_lambda_.9} parent=1 // pred_region
      %v253 = vld [vmem:[#allocation2] sm:$0x3]
      %v254 = vld [vmem:[%s2] sm:$0x1]
      %v256 = vlaneseq
      %v257 = vshrl.u32 %v256, 7
      %v258 = vsub.s32 0, %v257
      %v259 = vrot.slane %v254, %v258
      %v261 = vadd.f32 %v253, %v259
      %262 = vst [vmem:[#allocation3] sm:$0x3] %v261
    $region21: #{_lambda_.9} parent=1 // pred_fallthru
      _
    // Predicated region
    $region22: #{_lambda_.9} parent=1 // pred_check
      _
    $region23: #{_lambda_.9} parent=1 // pred_check_branch
      %264 = sbr.rel (0) target = $region25
    $region24: #{_lambda_.9} parent=1 // pred_region
      %s266 = ssub.s32 32, 32
      %267 = vsyncadd [#allocation4], %s266
      %s269 = sshll.u32 [#allocation3], 4
      %s270 = int_to_ptr.vmem [resolvable:$true] %s269
      %272 = dma.vmem_to_hbm [thread:$0]  %s270, 32, %s3, [#allocation4]
    $region25: #{_lambda_.9} parent=1 // pred_fallthru
      _
    // Predicated region
    $region26: #{_lambda_.9} parent=1 // pred_check
      _
    $region27: #{_lambda_.9} parent=1 // pred_check_branch
      %274 = sbr.rel (0) target = $region29
    $region28: #{_lambda_.9} parent=1 // pred_region
      %275 = dma.done [#allocation4], 32
    $region29: #{_lambda_.9} parent=1 // pred_fallthru
      _
    %276 = vsyncpa [#allocation4], 1

</llo_original>
